<compile_context>
chip_gen: v7x
topology: tpu7x:2x2x1
jax: 0.10.0
libtpu: 0.0.40
codegen_flags: <defaults>
</compile_context>

<pallas_src>
import jax
import jax.numpy as jnp
from jax.experimental import pallas as pl
from jax.experimental.pallas import tpu as pltpu

_BN_EPS = 1e-5
_MXU_DTYPE = jnp.bfloat16     # MXU operand dtype (accumulation is always f32)
_ACT_DTYPE = jnp.bfloat16     # dtype of the y1 / y2 intermediates in HBM
# Conservative per-grid-step working-set budget (incl. Pallas' 2x in/out
# double buffering).  Fits the default scoped-VMEM limit on v5e/v6e/v7x.
_VMEM_TILE_BUDGET = 8 * 1024 * 1024


# ---------------------------------------------------------------------------
# Tile-size selection (trace-time glue)
# ---------------------------------------------------------------------------
def _divisors_desc(n):
    return [d for d in range(n, 0, -1) if n % d == 0]


def _pick_conv_tile_h(h, w, cin, cin_p, cout, tile_h, budget):
    """Largest row-tile TH (divisor of H) whose per-step working set fits."""
    if tile_h is not None and h % tile_h == 0:
        return tile_h
    use_slab = cin_p < 128

    def step_bytes(th):
        xin = th * w * cin * 4 * 2                    # input tile, 2 buffers
        pad = (th + 2) * (w + 2) * cin_p * 4          # zero-bordered f32 scratch
        slab = th * w * (9 if use_slab else 1) * cin_p * 2
        acc = th * w * cout * 4
        out = th * w * cout * 2 * 2                   # bf16 output, 2 buffers
        return xin + pad + slab + acc + out

    for th in _divisors_desc(h):
        if step_bytes(th) <= budget:
            return th
    return _divisors_desc(h)[-1]


def _pick_ep_tile_h(h, w, c, tile_h, budget):
    """Largest row tile whose (TEP*W)-wide output block stays lane-dense."""
    def lane_dense(t):
        return t == h or (t * w) % 128 == 0

    if tile_h is not None and h % tile_h == 0 and lane_dense(tile_h):
        return tile_h
    for t in _divisors_desc(h):
        if lane_dense(t) and t * w * c * 16 <= budget:
            return t
    return h


def _make_halo_rows(x, th):
    """(N, HT, 2, W, C): rows (j*TH - 1) and (j*TH + TH) of every image, zero
    at the true image border.  Reads only ~2*HT rows of x - cheap glue that
    gives the H-tiled conv kernel its 1-row halo with plain BlockSpecs."""
    n, h, w, c = x.shape
    ht = h // th
    zero = jnp.zeros((n, 1, w, c), x.dtype)
    if ht == 1:
        top, bot = zero, zero
    else:
        top = jnp.concatenate([zero, x[:, th - 1:h - 1:th]], axis=1)
        bot = jnp.concatenate([x[:, th:h:th], zero], axis=1)
    return jnp.stack([top, bot], axis=2)


# ---------------------------------------------------------------------------
# Kernels
# ---------------------------------------------------------------------------
def _make_conv_stats_kernel(th, w, cin, cin_p, cout, fuse_prev_bn_relu):
    """3x3 conv (pad=1, no bias) on one (TH, W, Cin) row tile + BN statistics.

    A zero-bordered (TH+2, W+2, Cin_p) tile is staged in a VMEM scratch (one
    zero store + interior/halo row writes), then contracted on the MXU either
    as a single im2col slab (small Cin) or as 9 accumulated K=Cin_p matmuls
    (large Cin).  With `fuse_prev_bn_relu`, relu(x*scale + shift) of the
    previous BatchNorm is applied to the rows as they are staged (the true
    zero padding of the conv input is preserved exactly).
    """
    use_slab = cin_p < 128

    def kernel(*refs):
        if fuse_prev_bn_relu:
            (x_ref, halo_ref, scale_ref, shift_ref, w_ref,
             y_ref, st_ref, pad_ref) = refs
        else:
            x_ref, halo_ref, w_ref, y_ref, st_ref, pad_ref = refs

        hi = pl.program_id(1)

        if fuse_prev_bn_relu:
            s = scale_ref[...].reshape(1, 1, cin)
            b = shift_ref[...].reshape(1, 1, cin)

            def staged(v):
                return jnp.maximum(v.astype(jnp.float32) * s + b, 0.0)
        else:
            def staged(v):
                return v.astype(jnp.float32)

        # One full zero store keeps spatial border, channel tail and boundary
        # halo rows exactly zero; then write the interior and the halo rows.
        pad_ref[...] = jnp.zeros_like(pad_ref)
        pad_ref[1:th + 1, 1:w + 1, 0:cin] = staged(x_ref[0])

        @pl.when(hi > 0)                              # top halo row
        def _():
            pad_ref[0:1, 1:w + 1, 0:cin] = staged(halo_ref[0, 0, 0:1])

        @pl.when(hi < pl.num_programs(1) - 1)         # bottom halo row
        def _():
            pad_ref[th + 1:th + 2, 1:w + 1, 0:cin] = staged(halo_ref[0, 0, 1:2])

        if use_slab:
            # im2col: 9 shifted windows -> one MXU contraction with K=9*Cin_p.
            cols = [pad_ref[kh:kh + th, kw:kw + w, :]
                    .astype(_MXU_DTYPE).reshape(th * w, cin_p)
                    for kh in range(3) for kw in range(3)]
            slab = jnp.concatenate(cols, axis=1)          # (TH*W, 9*CinP)
            acc = jnp.dot(slab, w_ref[...],
                          preferred_element_type=jnp.float32)
        else:
            # Large Cin: skip the 9x slab, accumulate 9 K=Cin_p contractions.
            acc = jnp.zeros((th * w, cout), jnp.float32)
            for k in range(9):
                kh, kw = divmod(k, 3)
                win = (pad_ref[kh:kh + th, kw:kw + w, :]
                       .astype(_MXU_DTYPE).reshape(th * w, cin_p))
                acc = acc + jnp.dot(win, w_ref[k * cin_p:(k + 1) * cin_p, :],
                                    preferred_element_type=jnp.float32)

        y_ref[...] = acc.reshape(1, th, w, cout).astype(y_ref.dtype)
        # Per-tile channel sum / sum-of-squares (f32 accumulator) for the
        # exact two-pass BatchNorm under tiling.
        st_ref[...] = jnp.concatenate(
            [jnp.sum(acc, axis=0, keepdims=True),
             jnp.sum(acc * acc, axis=0, keepdims=True)],
            axis=0).reshape(1, 1, 2, cout)

    return kernel


def _bn_relu_transpose_kernel(y_ref, scale_ref, shift_ref, o_ref):
    """Folded BN (scale/shift) + ReLU + NHWC->NCHW for one row tile.

    Output block is (1, C, TEP*W): lane-dense stores and no separate XLA
    transpose over HBM for the final tensor.
    """
    _, tep, w, c = y_ref.shape
    m = tep * w
    z = y_ref[0].astype(jnp.float32)                      # (TEP, W, C)
    s = scale_ref[...].reshape(1, 1, c)
    b = shift_ref[...].reshape(1, 1, c)
    z = jnp.maximum(z * s + b, 0.0)
    z2 = z.reshape(m, c)
    # Pad up to native (8, 128) multiples so the transpose stays on the
    # aligned XLU path, then slice the valid rows back out.
    m_p = -(-m // 8) * 8
    c_p = -(-c // 128) * 128
    if c_p != c:
        z2 = jnp.concatenate([z2, jnp.zeros((m, c_p - c), jnp.float32)], axis=1)
    if m_p != m:
        z2 = jnp.concatenate([z2, jnp.zeros((m_p - m, c_p), jnp.float32)],
                             axis=0)
    zt = z2.T                                             # (C_p, M_p)
    o_ref[0] = zt[0:c, 0:m]


# ---------------------------------------------------------------------------
# Wrappers (glue)
# ---------------------------------------------------------------------------
def _conv3x3_with_stats(x, w9, prev_scale=None, prev_shift=None,
                        tile_h=None, vmem_budget=_VMEM_TILE_BUDGET):
    """H-tiled 3x3 conv over grid (N, H/TH) that also emits BN statistics.

    x:  (N, H, W, Cin) NHWC (f32 for conv1, bf16 for conv2)
    w9: (9, Cin, Cout) f32, tap-major (kh*3 + kw)
    Returns (y (N,H,W,Cout) bf16, stats (N, HT, 2, Cout) f32 = [sum, sumsq]).
    """
    n, h, w, cin = x.shape
    cout = w9.shape[-1]
    cin_p = max(8, -(-cin // 8) * 8)
    th = _pick_conv_tile_h(h, w, cin, cin_p, cout, tile_h, vmem_budget)
    n_ht = h // th

    # Weight prep: pad Cin to a sublane multiple, flatten taps, cast for MXU.
    wk = jnp.pad(w9, ((0, 0), (0, cin_p - cin), (0, 0)))
    wk = wk.reshape(9 * cin_p, cout).astype(_MXU_DTYPE)

    halo = _make_halo_rows(x, th)                        # (N, HT, 2, W, Cin)

    fuse = prev_scale is not None
    kernel = _make_conv_stats_kernel(th, w, cin, cin_p, cout, fuse)

    in_specs = [pl.BlockSpec((1, th, w, cin), lambda i, j: (i, j, 0, 0)),
                pl.BlockSpec((1, 1, 2, w, cin), lambda i, j: (i, j, 0, 0, 0))]
    args = [x, halo]
    if fuse:
        in_specs += [pl.BlockSpec((1, cin), lambda i, j: (0, 0)),
                     pl.BlockSpec((1, cin), lambda i, j: (0, 0))]
        args += [prev_scale.reshape(1, cin), prev_shift.reshape(1, cin)]
    # TODO(synk): for very large channel counts single-buffer this constant
    # weight block (pl.Buffered(1)) to save VMEM on v7x.
    in_specs.append(pl.BlockSpec((9 * cin_p, cout), lambda i, j: (0, 0)))
    args.append(wk)

    return pl.pallas_call(
        kernel,
        grid=(n, n_ht),
        in_specs=in_specs,
        out_specs=(pl.BlockSpec((1, th, w, cout), lambda i, j: (i, j, 0, 0)),
                   pl.BlockSpec((1, 1, 2, cout), lambda i, j: (i, j, 0, 0))),
        out_shape=(jax.ShapeDtypeStruct((n, h, w, cout), _ACT_DTYPE),
                   jax.ShapeDtypeStruct((n, n_ht, 2, cout), jnp.float32)),
        scratch_shapes=[pltpu.VMEM((th + 2, w + 2, cin_p), jnp.float32)],
        compiler_params=pltpu.CompilerParams(
            dimension_semantics=("parallel", "parallel")),
    )(*args)


def _bn_scale_shift(stats, count, gamma, beta, eps=_BN_EPS):
    """O(C) glue: reduce per-tile stats, fold BN affine into scale/shift.

    BatchNorm2d training-mode forward uses biased batch statistics over
    (N, H, W), matching PyTorch's fresh-module behaviour.
    """
    tot = jnp.sum(stats, axis=(0, 1))                    # (2, C)
    mean = tot[0] / count
    var = tot[1] / count - mean * mean                   # biased variance
    scale = gamma * jax.lax.rsqrt(var + eps)
    shift = beta - mean * scale
    return scale, shift


def _bn_relu_transpose(y, scale, shift, tile_h=None,
                       vmem_budget=_VMEM_TILE_BUDGET):
    """BN2+ReLU2 epilogue with the NHWC->NCHW transpose fused in.

    Returns (N, C, H*W) f32; the caller reshapes to (N, C, H, W) for free.
    """
    n, h, w, c = y.shape
    tep = _pick_ep_tile_h(h, w, c, tile_h, vmem_budget)
    return pl.pallas_call(
        _bn_relu_transpose_kernel,
        grid=(n, h // tep),
        in_specs=[pl.BlockSpec((1, tep, w, c), lambda i, j: (i, j, 0, 0)),
                  pl.BlockSpec((1, c), lambda i, j: (0, 0)),
                  pl.BlockSpec((1, c), lambda i, j: (0, 0))],
        out_specs=pl.BlockSpec((1, c, tep * w), lambda i, j: (i, 0, j)),
        out_shape=jax.ShapeDtypeStruct((n, c, h * w), jnp.float32),
        compiler_params=pltpu.CompilerParams(
            dimension_semantics=("parallel", "parallel")),
    )(y, scale.reshape(1, c), shift.reshape(1, c))


def dble_conv_block_forward(x_nchw, params, tile_h=None):
    """DbleConvBlock.forward (training-mode BN) on an NCHW input tensor."""
    # TODO(synk): accept NHWC directly to also drop this (small) input transpose.
    x = jnp.transpose(x_nchw.astype(jnp.float32), (0, 2, 3, 1))   # NCHW->NHWC
    n, h, w, _ = x.shape
    count = n * h * w

    # conv1 (+ per-tile BN1 statistics); y1 stored bf16.
    y1, st1 = _conv3x3_with_stats(x, params["w1"], tile_h=tile_h)
    s1, b1 = _bn_scale_shift(st1, count, params["gamma1"], params["beta1"])

    # BN1 + ReLU1 fused into conv2's producer; conv2 (+ BN2 statistics).
    y2, st2 = _conv3x3_with_stats(y1, params["w2"], s1, b1, tile_h=tile_h)
    s2, b2 = _bn_scale_shift(st2, count, params["gamma2"], params["beta2"])

    # BN2 + ReLU2 + NHWC->NCHW epilogue (lane-dense (N, C, H*W) blocks).
    out = _bn_relu_transpose(y2, s2, b2, tile_h=tile_h)
    return out.reshape(n, out.shape[1], h, w)


# ---------------------------------------------------------------------------
# Parameters & pure-JAX reference (for the self-test)
# ---------------------------------------------------------------------------
def init_params(key, in_chan, out_chan):
    """Deterministic params matching DbleConvBlock.__init__ shapes.

    Conv weights are stored tap-major (9, Cin, Cout); from a PyTorch
    (Cout, Cin, 3, 3) tensor this is w.permute(2, 3, 1, 0).reshape(9, Cin, Cout).
    BatchNorm2d init: weight=1, bias=0 (PyTorch default).
    """
    k1, k2 = jax.random.split(key)

    def conv_w(k, cin, cout):
        bound = 1.0 / (9.0 * cin) ** 0.5     # PyTorch Conv2d default bound
        return jax.random.uniform(k, (9, cin, cout), jnp.float32, -bound, bound)

    return {
        "w1": conv_w(k1, in_chan, out_chan),
        "gamma1": jnp.ones((out_chan,), jnp.float32),
        "beta1": jnp.zeros((out_chan,), jnp.float32),
        "w2": conv_w(k2, out_chan, out_chan),
        "gamma2": jnp.ones((out_chan,), jnp.float32),
        "beta2": jnp.zeros((out_chan,), jnp.float32),
    }


def _ref_conv3x3(x, w9):
    """Reference 3x3 conv (pad=1, no bias) with bf16 operands / f32 acc."""
    n, h, w, _ = x.shape
    cout = w9.shape[-1]
    xp = jnp.pad(x, ((0, 0), (1, 1), (1, 1), (0, 0))).astype(_MXU_DTYPE)
    wb = w9.astype(_MXU_DTYPE)
    acc = jnp.zeros((n, h, w, cout), jnp.float32)
    for kh in range(3):
        for kw in range(3):
            acc = acc + jnp.einsum(
                "nhwc,cd->nhwd", xp[:, kh:kh + h, kw:kw + w, :], wb[kh * 3 + kw],
                preferred_element_type=jnp.float32)
    return acc


def _ref_bn_relu(y, gamma, beta, eps=_BN_EPS):
    mean = jnp.mean(y, axis=(0, 1, 2))
    var = jnp.mean((y - mean) ** 2, axis=(0, 1, 2))
    return jnp.maximum((y - mean) * jax.lax.rsqrt(var + eps) * gamma + beta, 0.0)


def _ref_forward(x_nchw, p):
    x = jnp.transpose(x_nchw.astype(jnp.float32), (0, 2, 3, 1))
    x = _ref_bn_relu(_ref_conv3x3(x, p["w1"]), p["gamma1"], p["beta1"])
    x = _ref_bn_relu(_ref_conv3x3(x, p["w2"]), p["gamma2"], p["beta2"])
    return jnp.transpose(x, (0, 3, 1, 2))


# ---------------------------------------------------------------------------
# Self-test
# ---------------------------------------------------------------------------
if __name__ == "__main__":
    N, IN_CHAN, OUT_CHAN, H, W = 2, 4, 32, 16, 16

    key = jax.random.PRNGKey(0)
    kx, kp = jax.random.split(key)
    x = jax.random.normal(kx, (N, IN_CHAN, H, W), jnp.float32)
    params = init_params(kp, IN_CHAN, OUT_CHAN)

    ref = jax.block_until_ready(_ref_forward(x, params))

    # tile_h=8 exercises the halo'd H-tiled conv path and 128-lane epilogue
    # blocks; tile_h=None exercises the auto (whole-image-per-step) tiling.
    for th in (8, None):
        out = jax.block_until_ready(
            dble_conv_block_forward(x, params, tile_h=th))
        assert out.shape == (N, OUT_CHAN, H, W), out.shape
        assert bool(jnp.all(jnp.isfinite(out)))
        assert bool(jnp.all(out >= 0.0))                 # ReLU output
        max_err = float(jnp.max(jnp.abs(out - ref)))
        assert bool(jnp.allclose(out, ref, atol=5e-2, rtol=5e-2)), max_err

    print("KERNEL_OK")
</pallas_src>

<mosaic_0001>
module attributes {stable_mosaic.version = 11 : i64} {
  func.func @kernel(%arg0: i32, %arg1: i32, %arg2: memref<1x8x16x4xf32, #tpu.memory_space<vmem>>, %arg3: memref<1x1x2x16x4xf32, #tpu.memory_space<vmem>>, %arg4: memref<72x32xbf16, #tpu.memory_space<vmem>>, %arg5: memref<1x8x16x32xbf16, #tpu.memory_space<vmem>>, %arg6: memref<1x1x2x32xf32, #tpu.memory_space<vmem>>, %arg7: memref<10x18x8xf32, #tpu.memory_space<vmem>>) attributes {dimension_semantics = [#tpu.dimension_semantics<parallel>, #tpu.dimension_semantics<parallel>], iteration_bounds = array<i64: 2, 2>, scalar_prefetch = 0 : i64, scratch_operands = 1 : i64, tpu.core_type = #tpu.core_type<tc>, window_params = [{transform_indices = @transform_0, window_bounds = array<i64: 1, 8, 16, 4>}, {transform_indices = @transform_1, window_bounds = array<i64: 1, 1, 2, 16, 4>}, {pipeline_mode = #tpu.pipeline_mode<synchronous>, transform_indices = @transform_2, window_bounds = array<i64: 72, 32>}, {transform_indices = @transform_3, window_bounds = array<i64: 1, 8, 16, 32>}, {transform_indices = @transform_4, window_bounds = array<i64: 1, 1, 2, 32>}]} {
    %cst = arith.constant 0.000000e+00 : f32
    %0 = vector.broadcast %cst : f32 to vector<10x18x8xf32>
    %c0 = arith.constant 0 : index
    %c0_0 = arith.constant 0 : index
    %c0_1 = arith.constant 0 : index
    %1 = vector.load %arg7[%c0, %c0_0, %c0_1] : memref<10x18x8xf32, #tpu.memory_space<vmem>>, vector<10x18x8xf32>
    tpu.vector_store %arg7[%c0, %c0_0, %c0_1], %0 {strides = array<i32>} : memref<10x18x8xf32, #tpu.memory_space<vmem>>, vector<10x18x8xf32>,
    %c0_2 = arith.constant 0 : index
    %c0_3 = arith.constant 0 : index
    %c0_4 = arith.constant 0 : index
    %c0_5 = arith.constant 0 : index
    %2 = vector.load %arg2[%c0_2, %c0_3, %c0_4, %c0_5] : memref<1x8x16x4xf32, #tpu.memory_space<vmem>>, vector<1x8x16x4xf32>
    %3 = vector.shape_cast %2 : vector<1x8x16x4xf32> to vector<8x16x4xf32>
    %c1 = arith.constant 1 : index
    %c1_6 = arith.constant 1 : index
    %c0_7 = arith.constant 0 : index
    %4 = vector.load %arg7[%c1, %c1_6, %c0_7] : memref<10x18x8xf32, #tpu.memory_space<vmem>>, vector<8x16x4xf32>
    tpu.vector_store %arg7[%c1, %c1_6, %c0_7], %3 {strides = array<i32>} : memref<10x18x8xf32, #tpu.memory_space<vmem>>, vector<8x16x4xf32>,
    %c0_i32 = arith.constant 0 : i32
    %5 = arith.cmpi sgt, %arg1, %c0_i32 : i32
    %6 = arith.extui %5 : i1 to i32
    %c0_i32_8 = arith.constant 0 : i32
    %7 = arith.cmpi ne, %6, %c0_i32_8 : i32
    scf.if %7 {
      %c0_49 = arith.constant 0 : index
      %c0_50 = arith.constant 0 : index
      %c0_51 = arith.constant 0 : index
      %c0_52 = arith.constant 0 : index
      %c0_53 = arith.constant 0 : index
      %52 = vector.load %arg3[%c0_49, %c0_50, %c0_51, %c0_52, %c0_53] : memref<1x1x2x16x4xf32, #tpu.memory_space<vmem>>, vector<1x1x1x16x4xf32>
      %53 = vector.shape_cast %52 : vector<1x1x1x16x4xf32> to vector<1x16x4xf32>
      %c0_54 = arith.constant 0 : index
      %c1_55 = arith.constant 1 : index
      %c0_56 = arith.constant 0 : index
      %54 = vector.load %arg7[%c0_54, %c1_55, %c0_56] : memref<10x18x8xf32, #tpu.memory_space<vmem>>, vector<1x16x4xf32>
      tpu.vector_store %arg7[%c0_54, %c1_55, %c0_56], %53 {strides = array<i32>} : memref<10x18x8xf32, #tpu.memory_space<vmem>>, vector<1x16x4xf32>,
    } else {
    }
    %c1_i32 = arith.constant 1 : i32
    %8 = arith.cmpi slt, %arg1, %c1_i32 : i32
    %9 = arith.extui %8 : i1 to i32
    %c0_i32_9 = arith.constant 0 : i32
    %10 = arith.cmpi ne, %9, %c0_i32_9 : i32
    scf.if %10 {
      %c0_49 = arith.constant 0 : index
      %c0_50 = arith.constant 0 : index
      %c1_51 = arith.constant 1 : index
      %c0_52 = arith.constant 0 : index
      %c0_53 = arith.constant 0 : index
      %52 = vector.load %arg3[%c0_49, %c0_50, %c1_51, %c0_52, %c0_53] : memref<1x1x2x16x4xf32, #tpu.memory_space<vmem>>, vector<1x1x1x16x4xf32>
      %53 = vector.shape_cast %52 : vector<1x1x1x16x4xf32> to vector<1x16x4xf32>
      %c9 = arith.constant 9 : index
      %c1_54 = arith.constant 1 : index
      %c0_55 = arith.constant 0 : index
      %54 = vector.load %arg7[%c9, %c1_54, %c0_55] : memref<10x18x8xf32, #tpu.memory_space<vmem>>, vector<1x16x4xf32>
      tpu.vector_store %arg7[%c9, %c1_54, %c0_55], %53 {strides = array<i32>} : memref<10x18x8xf32, #tpu.memory_space<vmem>>, vector<1x16x4xf32>,
    } else {
    }
    %c0_10 = arith.constant 0 : index
    %c0_11 = arith.constant 0 : index
    %c0_12 = arith.constant 0 : index
    %11 = vector.load %arg7[%c0_10, %c0_11, %c0_12] : memref<10x18x8xf32, #tpu.memory_space<vmem>>, vector<8x16x8xf32>
    %12 = arith.truncf %11 : vector<8x16x8xf32> to vector<8x16x8xbf16>
    %13 = vector.shape_cast %12 : vector<8x16x8xbf16> to vector<128x8xbf16>
    %c0_13 = arith.constant 0 : index
    %c1_14 = arith.constant 1 : index
    %c0_15 = arith.constant 0 : index
    %14 = vector.load %arg7[%c0_13, %c1_14, %c0_15] : memref<10x18x8xf32, #tpu.memory_space<vmem>>, vector<8x16x8xf32>
    %15 = arith.truncf %14 : vector<8x16x8xf32> to vector<8x16x8xbf16>
    %16 = vector.shape_cast %15 : vector<8x16x8xbf16> to vector<128x8xbf16>
    %c0_16 = arith.constant 0 : index
    %c2 = arith.constant 2 : index
    %c0_17 = arith.constant 0 : index
    %17 = vector.load %arg7[%c0_16, %c2, %c0_17] : memref<10x18x8xf32, #tpu.memory_space<vmem>>, vector<8x16x8xf32>
    %18 = arith.truncf %17 : vector<8x16x8xf32> to vector<8x16x8xbf16>
    %19 = vector.shape_cast %18 : vector<8x16x8xbf16> to vector<128x8xbf16>
    %c1_18 = arith.constant 1 : index
    %c0_19 = arith.constant 0 : index
    %c0_20 = arith.constant 0 : index
    %20 = vector.load %arg7[%c1_18, %c0_19, %c0_20] : memref<10x18x8xf32, #tpu.memory_space<vmem>>, vector<8x16x8xf32>
    %21 = arith.truncf %20 : vector<8x16x8xf32> to vector<8x16x8xbf16>
    %22 = vector.shape_cast %21 : vector<8x16x8xbf16> to vector<128x8xbf16>
    %c1_21 = arith.constant 1 : index
    %c1_22 = arith.constant 1 : index
    %c0_23 = arith.constant 0 : index
    %23 = vector.load %arg7[%c1_21, %c1_22, %c0_23] : memref<10x18x8xf32, #tpu.memory_space<vmem>>, vector<8x16x8xf32>
    %24 = arith.truncf %23 : vector<8x16x8xf32> to vector<8x16x8xbf16>
    %25 = vector.shape_cast %24 : vector<8x16x8xbf16> to vector<128x8xbf16>
    %c1_24 = arith.constant 1 : index
    %c2_25 = arith.constant 2 : index
    %c0_26 = arith.constant 0 : index
    %26 = vector.load %arg7[%c1_24, %c2_25, %c0_26] : memref<10x18x8xf32, #tpu.memory_space<vmem>>, vector<8x16x8xf32>
    %27 = arith.truncf %26 : vector<8x16x8xf32> to vector<8x16x8xbf16>
    %28 = vector.shape_cast %27 : vector<8x16x8xbf16> to vector<128x8xbf16>
    %c2_27 = arith.constant 2 : index
    %c0_28 = arith.constant 0 : index
    %c0_29 = arith.constant 0 : index
    %29 = vector.load %arg7[%c2_27, %c0_28, %c0_29] : memref<10x18x8xf32, #tpu.memory_space<vmem>>, vector<8x16x8xf32>
    %30 = arith.truncf %29 : vector<8x16x8xf32> to vector<8x16x8xbf16>
    %31 = vector.shape_cast %30 : vector<8x16x8xbf16> to vector<128x8xbf16>
    %c2_30 = arith.constant 2 : index
    %c1_31 = arith.constant 1 : index
    %c0_32 = arith.constant 0 : index
    %32 = vector.load %arg7[%c2_30, %c1_31, %c0_32] : memref<10x18x8xf32, #tpu.memory_space<vmem>>, vector<8x16x8xf32>
    %33 = arith.truncf %32 : vector<8x16x8xf32> to vector<8x16x8xbf16>
    %34 = vector.shape_cast %33 : vector<8x16x8xbf16> to vector<128x8xbf16>
    %c2_33 = arith.constant 2 : index
    %c2_34 = arith.constant 2 : index
    %c0_35 = arith.constant 0 : index
    %35 = vector.load %arg7[%c2_33, %c2_34, %c0_35] : memref<10x18x8xf32, #tpu.memory_space<vmem>>, vector<8x16x8xf32>
    %36 = arith.truncf %35 : vector<8x16x8xf32> to vector<8x16x8xbf16>
    %37 = vector.shape_cast %36 : vector<8x16x8xbf16> to vector<128x8xbf16>
    %38 = tpu.concatenate %13, %16, %19, %22, %25, %28, %31, %34, %37 in 1 : vector<128x8xbf16>, vector<128x8xbf16>, vector<128x8xbf16>, vector<128x8xbf16>, vector<128x8xbf16>, vector<128x8xbf16>, vector<128x8xbf16>, vector<128x8xbf16>, vector<128x8xbf16> -> vector<128x72xbf16>
    %c0_36 = arith.constant 0 : index
    %c0_37 = arith.constant 0 : index
    %39 = vector.load %arg4[%c0_36, %c0_37] : memref<72x32xbf16, #tpu.memory_space<vmem>>, vector<72x32xbf16>
    %cst_38 = arith.constant dense<0.000000e+00> : vector<128x32xf32>
    %40 = tpu.matmul %38, %39, %cst_38 {dimension_numbers = #tpu.dot_dimension_numbers<[1], [0], [0], [1], [0, 0, 1, 1], [], []>} : vector<128x72xbf16>, vector<72x32xbf16>, vector<128x32xf32> -> vector<128x32xf32>
    %41 = vector.shape_cast %40 : vector<128x32xf32> to vector<1x8x16x32xf32>
    %42 = arith.truncf %41 : vector<1x8x16x32xf32> to vector<1x8x16x32xbf16>
    %c0_39 = arith.constant 0 : index
    %c0_40 = arith.constant 0 : index
    %c0_41 = arith.constant 0 : index
    %c0_42 = arith.constant 0 : index
    %43 = vector.load %arg5[%c0_39, %c0_40, %c0_41, %c0_42] : memref<1x8x16x32xbf16, #tpu.memory_space<vmem>>, vector<1x8x16x32xbf16>
    tpu.vector_store %arg5[%c0_39, %c0_40, %c0_41, %c0_42], %42 {strides = array<i32>} : memref<1x8x16x32xbf16, #tpu.memory_space<vmem>>, vector<1x8x16x32xbf16>,
    %cst_43 = arith.constant dense<0.000000e+00> : vector<32xf32>
    %44 = vector.multi_reduction <add>, %40, %cst_43 [0] : vector<128x32xf32> to vector<32xf32>
    %45 = vector.shape_cast %44 : vector<32xf32> to vector<1x32xf32>
    %46 = arith.mulf %40, %40 : vector<128x32xf32>
    %cst_44 = arith.constant dense<0.000000e+00> : vector<32xf32>
    %47 = vector.multi_reduction <add>, %46, %cst_44 [0] : vector<128x32xf32> to vector<32xf32>
    %48 = vector.shape_cast %47 : vector<32xf32> to vector<1x32xf32>
    %49 = tpu.concatenate %45, %48 in 0 : vector<1x32xf32>, vector<1x32xf32> -> vector<2x32xf32>
    %50 = vector.shape_cast %49 : vector<2x32xf32> to vector<1x1x2x32xf32>
    %c0_45 = arith.constant 0 : index
    %c0_46 = arith.constant 0 : index
    %c0_47 = arith.constant 0 : index
    %c0_48 = arith.constant 0 : index
    %51 = vector.load %arg6[%c0_45, %c0_46, %c0_47, %c0_48] : memref<1x1x2x32xf32, #tpu.memory_space<vmem>>, vector<1x1x2x32xf32>
    tpu.vector_store %arg6[%c0_45, %c0_46, %c0_47, %c0_48], %50 {strides = array<i32>} : memref<1x1x2x32xf32, #tpu.memory_space<vmem>>, vector<1x1x2x32xf32>,
    return
  }
  func.func @transform_0(%arg0: i32, %arg1: i32) -> (i32, i32, i32, i32) {
    %c0_i32 = arith.constant 0 : i32
    %c0_i32_0 = arith.constant 0 : i32
    %c0_i32_1 = arith.constant 0 : i32
    return %arg0, %arg1, %c0_i32, %c0_i32_0 : i32, i32, i32, i32
  }
  func.func @transform_1(%arg0: i32, %arg1: i32) -> (i32, i32, i32, i32, i32) {
    %c0_i32 = arith.constant 0 : i32
    %c0_i32_0 = arith.constant 0 : i32
    %c0_i32_1 = arith.constant 0 : i32
    %c0_i32_2 = arith.constant 0 : i32
    return %arg0, %arg1, %c0_i32, %c0_i32_0, %c0_i32_1 : i32, i32, i32, i32, i32
  }
  func.func @transform_2(%arg0: i32, %arg1: i32) -> (i32, i32) {
    %c0_i32 = arith.constant 0 : i32
    %c0_i32_0 = arith.constant 0 : i32
    %c0_i32_1 = arith.constant 0 : i32
    return %c0_i32, %c0_i32_0 : i32, i32
  }
  func.func @transform_3(%arg0: i32, %arg1: i32) -> (i32, i32, i32, i32) {
    %c0_i32 = arith.constant 0 : i32
    %c0_i32_0 = arith.constant 0 : i32
    %c0_i32_1 = arith.constant 0 : i32
    return %arg0, %arg1, %c0_i32, %c0_i32_0 : i32, i32, i32, i32
  }
  func.func @transform_4(%arg0: i32, %arg1: i32) -> (i32, i32, i32, i32) {
    %c0_i32 = arith.constant 0 : i32
    %c0_i32_0 = arith.constant 0 : i32
    %c0_i32_1 = arith.constant 0 : i32
    return %arg0, %arg1, %c0_i32, %c0_i32_0 : i32, i32, i32, i32
  }
}

</mosaic_0001>

<llo_original>
// kernel: tpu_custom_call.1
$region0: #{tpu_custom_call.1}
  #allocation0 [shape = 'u32[]', space=smem, size = 0x4, offset = 0x4, fixed_abs, tag = 'smem constant byte address 0x4 - core index']
  #allocation1 [shape = 'u32[144,128]{1,0:T(1,128)}', space=vmem, size = 0x12000, scoped, tag = 'internal scratch']
  #allocation2 [shape = 'f32[10,18,8]{2,1,0:T(8,128)}', space=vmem, size = 0x1e000, scoped, tag = 'scratch operand']
  %s0 = inlined_call_operand.vmem [shape: f32[2,16,16,4], index: 0, kind: input, shape index: {}]
  %s1 = inlined_call_operand.vmem [shape: f32[2,2,2,16,4], index: 1, kind: input, shape index: {}]
  %s2 = inlined_call_operand.vmem [shape: bf16[72,32], index: 2, kind: input, shape index: {}]
  %s3 = inlined_call_operand.hbm [shape: bf16[2,16,16,32], index: 3, kind: output, shape index: {0}]
  %s4 = inlined_call_operand.hbm [shape: f32[2,2,2,32], index: 4, kind: output, shape index: {1}]
  %5 = xla_tuple %s3, %s4
  %s6 = sld [smem:[#allocation0]]
  $region61: #{tpu_custom_call.1} parent=0
    _
  %s8 = ssub.s32 1, %s6
  %s9 = scalar_select 0, %s8, %s6
  $region1: #{tpu_custom_call.1} parent=0
    #allocation3 [shape = 'u8[65536]{0}', space=vmem, size = 0x10000, scoped, tag = 'output window, operand 0']
    #allocation4 [shape = 's32[2]{0}', space=sflag, size = 0x8, scoped, tag = 'scoped memory for tpu_custom_call.1']
    #allocation5 [shape = 'u8[2048]{0}', space=vmem, size = 0x800, scoped, tag = 'output window, operand 1']
    #allocation6 [shape = 's32[2]{0}', space=sflag, size = 0x8, scoped, tag = 'scoped memory for tpu_custom_call.1']
    %10 = vsyncpa [#allocation4], 0
    %s11 = scalar_lea.sflag [#allocation4], 1
    %12 = vsyncpa %s11, 0
    %13 = vsyncpa [#allocation6], 0
    %s14 = scalar_lea.sflag [#allocation6], 1
    %15 = vsyncpa %s14, 0
    loop: start=0, step=1, limit=6
    $region2: #{tpu_custom_call.1} parent=1 // loop_pre_header
      _
    $region3: #{tpu_custom_call.1} parent=1 // loop_header
      %s17 = sphi 0, %s21
      %p18 = scmp.ge.s32.totalorder %s17, 6
      %s24 = sphi 0, %s36
      %s25 = sphi 0, %s32
      %s26 = sphi 0, %s24
      %s27 = sphi 0, %s25
      %s28 = sphi 0, %s26
      %s29 = sphi 0, %s27
      %s41 = sphi 0, %s43
      %s44 = sphi 0, %s41
      %s45 = sphi 0, %s44
      %s61 = sphi 0, %s45
      %s69 = sphi 0, %s71
      %s72 = sphi 0, %s69
      %s73 = sphi 0, %s72
      %s89 = sphi 0, %s73
      %s93 = sphi 0, %s93
      %s95 = sphi 0, %s93
      %s96 = sphi 0, %s95
      %s110 = sphi 0, %s96
      %s118 = sphi 0, %s120
      %s121 = sphi 0, %s118
      %s122 = sphi 0, %s121
      %s138 = sphi 0, %s122
      %s146 = sphi 0, %s148
      %s149 = sphi 0, %s146
      %s150 = sphi 0, %s149
      %s166 = sphi 0, %s150
    $region4: #{tpu_custom_call.1} parent=1 // loop_header_branch
      %20 = sbr.rel (%p18) target = $region8
    $region5: #{tpu_custom_call.1} parent=1 // loop_body
      %s22 = ssub.s32 %s17, 1
      %s23 = ssub.s32 %s17, 2
      %s30 = sadd.s32 1, %s25
      %p31 = scmp.ge.s32.totalorder %s30, 2
      %s32 = scalar_select %p31, 0, %s30
      %s33 = sadd.s32 1, %s24
      %s34 = scalar_select %p31, %s33, %s24
      %p35 = scmp.ge.s32.totalorder %s34, 2
      %s36 = scalar_select %p35, 0, %s34
      %s37 = ssub.s32 %s24, %s36
      %s38 = ssub.s32 %s25, %s32
      %s39 = sor.u32 %s37, %s38
      %p40 = scmp.eq.s32.totalorder %s39, 0
      %s42 = sadd.s32 %s41, 1
      %s43 = scalar_select %p40, %s41, %s42
      %p46 = pneg %p40
      %p47 = scmp.eq.s32.totalorder %s17, 3
      %p48 = por %p46, %p47
      %p49 = scmp.ne.s32.totalorder %s41, %s44
      %p50 = scmp.eq.s32.totalorder %s17, 0
      %p51 = por %p49, %p50
      %p52 = scmp.ne.s32.totalorder %s41, %s44
      %p53 = scmp.eq.s32.totalorder %s22, 3
      %p54 = por %p52, %p53
      %p55 = scmp.ne.s32.totalorder %s44, %s45
      %p56 = scmp.eq.s32.totalorder %s22, 0
      %p57 = por %p55, %p56
      %p58 = scmp.ne.s32.totalorder %s44, %s45
      %p59 = scmp.eq.s32.totalorder %s23, 3
      %p60 = por %p58, %p59
      %p62 = scmp.ne.s32.totalorder %s45, %s61
      %p63 = scmp.eq.s32.totalorder %s23, 0
      %p64 = por %p62, %p63
      %s65 = ssub.s32 %s24, %s36
      %s66 = ssub.s32 %s25, %s32
      %s67 = sor.u32 %s65, %s66
      %p68 = scmp.eq.s32.totalorder %s67, 0
      %s70 = sadd.s32 %s69, 1
      %s71 = scalar_select %p68, %s69, %s70
      %p74 = pneg %p68
      %p75 = scmp.eq.s32.totalorder %s17, 3
      %p76 = por %p74, %p75
      %p77 = scmp.ne.s32.totalorder %s69, %s72
      %p78 = scmp.eq.s32.totalorder %s17, 0
      %p79 = por %p77, %p78
      %p80 = scmp.ne.s32.totalorder %s69, %s72
      %p81 = scmp.eq.s32.totalorder %s22, 3
      %p82 = por %p80, %p81
      %p83 = scmp.ne.s32.totalorder %s72, %s73
      %p84 = scmp.eq.s32.totalorder %s22, 0
      %p85 = por %p83, %p84
      %p86 = scmp.ne.s32.totalorder %s72, %s73
      %p87 = scmp.eq.s32.totalorder %s23, 3
      %p88 = por %p86, %p87
      %p90 = scmp.ne.s32.totalorder %s73, %s89
      %p91 = scmp.eq.s32.totalorder %s23, 0
      %p92 = por %p90, %p91
      %s94 = sadd.s32 %s93, 1
      %p97 = scmp.eq.s32.totalorder %s17, 3
      %p98 = scmp.ne.s32.totalorder %s93, %s95
      %p99 = scmp.eq.s32.totalorder %s17, 0
      %p100 = por %p98, %p99
      %p101 = scmp.ne.s32.totalorder %s93, %s95
      %p102 = scmp.eq.s32.totalorder %s22, 3
      %p103 = por %p101, %p102
      %p104 = scmp.ne.s32.totalorder %s95, %s96
      %p105 = scmp.eq.s32.totalorder %s22, 0
      %p106 = por %p104, %p105
      %p107 = scmp.ne.s32.totalorder %s95, %s96
      %p108 = scmp.eq.s32.totalorder %s23, 3
      %p109 = por %p107, %p108
      %p111 = scmp.ne.s32.totalorder %s96, %s110
      %p112 = scmp.eq.s32.totalorder %s23, 0
      %p113 = por %p111, %p112
      %s114 = ssub.s32 %s24, %s36
      %s115 = ssub.s32 %s25, %s32
      %s116 = sor.u32 %s114, %s115
      %p117 = scmp.eq.s32.totalorder %s116, 0
      %s119 = sadd.s32 %s118, 1
      %s120 = scalar_select %p117, %s118, %s119
      %p123 = pneg %p117
      %p124 = scmp.eq.s32.totalorder %s17, 3
      %p125 = por %p123, %p124
      %p126 = scmp.ne.s32.totalorder %s118, %s121
      %p127 = scmp.eq.s32.totalorder %s17, 0
      %p128 = por %p126, %p127
      %p129 = scmp.ne.s32.totalorder %s118, %s121
      %p130 = scmp.eq.s32.totalorder %s22, 3
      %p131 = por %p129, %p130
      %p132 = scmp.ne.s32.totalorder %s121, %s122
      %p133 = scmp.eq.s32.totalorder %s22, 0
      %p134 = por %p132, %p133
      %p135 = scmp.ne.s32.totalorder %s121, %s122
      %p136 = scmp.eq.s32.totalorder %s23, 3
      %p137 = por %p135, %p136
      %p139 = scmp.ne.s32.totalorder %s122, %s138
      %p140 = scmp.eq.s32.totalorder %s23, 0
      %p141 = por %p139, %p140
      %s142 = ssub.s32 %s24, %s36
      %s143 = ssub.s32 %s25, %s32
      %s144 = sor.u32 %s142, %s143
      %p145 = scmp.eq.s32.totalorder %s144, 0
      %s147 = sadd.s32 %s146, 1
      %s148 = scalar_select %p145, %s146, %s147
      %p151 = pneg %p145
      %p152 = scmp.eq.s32.totalorder %s17, 3
      %p153 = por %p151, %p152
      %p154 = scmp.ne.s32.totalorder %s146, %s149
      %p155 = scmp.eq.s32.totalorder %s17, 0
      %p156 = por %p154, %p155
      %p157 = scmp.ne.s32.totalorder %s146, %s149
      %p158 = scmp.eq.s32.totalorder %s22, 3
      %p159 = por %p157, %p158
      %p160 = scmp.ne.s32.totalorder %s149, %s150
      %p161 = scmp.eq.s32.totalorder %s22, 0
      %p162 = por %p160, %p161
      %p163 = scmp.ne.s32.totalorder %s149, %s150
      %p164 = scmp.eq.s32.totalorder %s23, 3
      %p165 = por %p163, %p164
      %p167 = scmp.ne.s32.totalorder %s150, %s166
      %p168 = scmp.eq.s32.totalorder %s23, 0
      %p169 = por %p167, %p168
      %p170 = scmp.le.s32.totalorder 1, %s17
      %p171 = scmp.lt.s32.totalorder %s17, 5
      %p172 = pnand %p170, %p171
      %p173 = pneg %p172
      // Predicated region
      $region9: #{tpu_custom_call.1} parent=5 // pred_check
        _
      $region10: #{tpu_custom_call.1} parent=5 // pred_check_branch
        %175 = sbr.rel (%p172) target = $region12
      $region11: #{tpu_custom_call.1} parent=5 // pred_region
        %s176 = ssub.s32 %s17, 1
        // Predicated region
        $region13: #{tpu_custom_call.1} parent=11 // pred_check
          %p177 = pneg %p106
        $region14: #{tpu_custom_call.1} parent=11 // pred_check_branch
          %179 = sbr.rel (%p177) target = $region16
        $region15: #{tpu_custom_call.1} parent=11 // pred_region
          _
        $region16: #{tpu_custom_call.1} parent=11 // pred_fallthru
          _
      $region12: #{tpu_custom_call.1} parent=5 // pred_fallthru
        _
      %p180 = scmp.lt.s32.totalorder %s17, 4
      // Predicated region
      $region17: #{tpu_custom_call.1} parent=5 // pred_check
        %p181 = pneg %p180
      $region18: #{tpu_custom_call.1} parent=5 // pred_check_branch
        %183 = sbr.rel (%p181) target = $region20
      $region19: #{tpu_custom_call.1} parent=5 // pred_region
        // Predicated region
        $region21: #{tpu_custom_call.1} parent=19 // pred_check
          %p184 = pneg %p51
        $region22: #{tpu_custom_call.1} parent=19 // pred_check_branch
          %186 = sbr.rel (%p184) target = $region24
        $region23: #{tpu_custom_call.1} parent=19 // pred_region
          %s187 = smul.u32 8, %s25
          %p188 = scmp.lt.s32.totalorder %s24, 1
          %s189 = scalar_select %p188, %s24, 1
          %p190 = scmp.lt.s32.totalorder %s187, 15
          %s191 = scalar_select %p190, %s187, 15
          %s192 = smul.addr %s191, 2
          %s193 = smul.addr %s189, 32
          %s194 = sadd.s32 %s192, %s193
          %s195 = smul.addr %s194, 8
          %s196 = scalar_lea.vmem %s0, %s195
          %s197 = smul.u32 8, %s25
        $region24: #{tpu_custom_call.1} parent=19 // pred_fallthru
          _
        // Predicated region
        $region25: #{tpu_custom_call.1} parent=19 // pred_check
          %p198 = pneg %p79
        $region26: #{tpu_custom_call.1} parent=19 // pred_check_branch
          %200 = sbr.rel (%p198) target = $region28
        $region27: #{tpu_custom_call.1} parent=19 // pred_region
          %p201 = scmp.lt.s32.totalorder %s24, 1
          %s202 = scalar_select %p201, %s24, 1
          %p203 = scmp.lt.s32.totalorder %s25, 1
          %s204 = scalar_select %p203, %s25, 1
          %s205 = smul.addr %s204, 4
          %s206 = smul.addr %s202, 8
          %s207 = sadd.s32 %s205, %s206
          %s208 = smul.addr %s207, 8
          %s209 = scalar_lea.vmem %s1, %s208
        $region28: #{tpu_custom_call.1} parent=19 // pred_fallthru
          _
      $region20: #{tpu_custom_call.1} parent=5 // pred_fallthru
        _
      %p210 = scmp.le.s32.totalorder 1, %s17
      %p211 = scmp.lt.s32.totalorder %s17, 5
      %p212 = pnand %p210, %p211
      %p213 = pneg %p212
      // Predicated region
      $region29: #{tpu_custom_call.1} parent=5 // pred_check
        _
      $region30: #{tpu_custom_call.1} parent=5 // pred_check_branch
        %215 = sbr.rel (%p212) target = $region32
      $region31: #{tpu_custom_call.1} parent=5 // pred_region
        %s216 = ssub.s32 %s17, 1
        %s217 = smul.u32 8, %s27
        %p218 = scmp.lt.s32.totalorder %s26, 1
        %s219 = scalar_select %p218, %s26, 1
        %p220 = scmp.lt.s32.totalorder %s217, 15
        %s221 = scalar_select %p220, %s217, 15
        %s222 = smul.addr %s221, 2
        %s223 = smul.addr %s219, 32
        %s224 = sadd.s32 %s222, %s223
        %s225 = smul.addr %s224, 8
        %s226 = scalar_lea.vmem %s0, %s225
        %p227 = pneg %p57
        %p228 = pneg %p54
        %p229 = scmp.lt.s32.totalorder %s26, 1
        %s230 = scalar_select %p229, %s26, 1
        %p231 = scmp.lt.s32.totalorder %s27, 1
        %s232 = scalar_select %p231, %s27, 1
        %s233 = smul.addr %s232, 4
        %s234 = smul.addr %s230, 8
        %s235 = sadd.s32 %s233, %s234
        %s236 = smul.addr %s235, 8
        %s237 = scalar_lea.vmem %s1, %s236
        %p238 = pneg %p85
        %p239 = pneg %p82
        %p240 = pneg %p106
        %p241 = pneg %p103
        %p242 = pneg %p134
        %p243 = pneg %p131
        %s244 = sand.u32 %s121, 1
        %s245 = scalar_lea.sflag [#allocation4], %s244
        %s246 = sand.u32 %s121, 1
        %s247 = smul.addr %s246, 64
        %s248 = scalar_lea.vmem [#allocation3], %s247
        %p249 = pneg %p162
        %p250 = pneg %p159
        %s251 = sand.u32 %s149, 1
        %s252 = scalar_lea.sflag [#allocation6], %s251
        %s253 = sand.u32 %s149, 1
        %s254 = smul.addr %s253, 2
        %s255 = scalar_lea.vmem [#allocation5], %s254
        %s256 = smul.u32 8, %s27
        %p257 = scmp.lt.s32.totalorder %s26, 1
        %s258 = scalar_select %p257, %s26, 1
        %p259 = scmp.lt.s32.totalorder %s256, 15
        %s260 = scalar_select %p259, %s256, 15
        %s261 = smul.addr %s260, 2
        %s262 = smul.addr %s258, 32
        %s263 = sadd.s32 %s261, %s262
        %s264 = smul.addr %s263, 8
        %s265 = scalar_lea.vmem %s0, %s264
        %s266 = smul.u32 8, %s27
        %p267 = scmp.lt.s32.totalorder %s26, 1
        %s268 = scalar_select %p267, %s26, 1
        %p269 = scmp.lt.s32.totalorder %s27, 1
        %s270 = scalar_select %p269, %s27, 1
        %s271 = smul.addr %s270, 4
        %s272 = smul.addr %s268, 8
        %s273 = sadd.s32 %s271, %s272
        %s274 = smul.addr %s273, 8
        %s275 = scalar_lea.vmem %s1, %s274
        %s276 = smul.u32 8, %s27
        %vm278 = vcmask 64512
        %279 = vst.msk [vmem:[#allocation2] sm:$0xff] %vm278, 0.0
        %280 = vst.msk [vmem:[#allocation2 + $0x8] sm:$0xff] %vm278, 0.0
        %vm281 = vcmask 58368
        %282 = vst.msk [vmem:[#allocation2 + $0x10] sm:$0x3] %vm281, 0.0
        %283 = vst.msk [vmem:[#allocation2 + $0x18] sm:$0xff] %vm278, 0.0
        %284 = vst.msk [vmem:[#allocation2 + $0x20] sm:$0xff] %vm278, 0.0
        %285 = vst.msk [vmem:[#allocation2 + $0x28] sm:$0x3] %vm281, 0.0
        %286 = vst.msk [vmem:[#allocation2 + $0x30] sm:$0xff] %vm278, 0.0
        %287 = vst.msk [vmem:[#allocation2 + $0x38] sm:$0xff] %vm278, 0.0
        %288 = vst.msk [vmem:[#allocation2 + $0x40] sm:$0x3] %vm281, 0.0
        %289 = vst.msk [vmem:[#allocation2 + $0x48] sm:$0xff] %vm278, 0.0
        %290 = vst.msk [vmem:[#allocation2 + $0x50] sm:$0xff] %vm278, 0.0
        %291 = vst.msk [vmem:[#allocation2 + $0x58] sm:$0x3] %vm281, 0.0
        %292 = vst.msk [vmem:[#allocation2 + $0x60] sm:$0xff] %vm278, 0.0
        %293 = vst.msk [vmem:[#allocation2 + $0x68] sm:$0xff] %vm278, 0.0
        %294 = vst.msk [vmem:[#allocation2 + $0x70] sm:$0x3] %vm281, 0.0
        %295 = vst.msk [vmem:[#allocation2 + $0x78] sm:$0xff] %vm278, 0.0
        %296 = vst.msk [vmem:[#allocation2 + $0x80] sm:$0xff] %vm278, 0.0
        %297 = vst.msk [vmem:[#allocation2 + $0x88] sm:$0x3] %vm281, 0.0
        %298 = vst.msk [vmem:[#allocation2 + $0x90] sm:$0xff] %vm278, 0.0
        %299 = vst.msk [vmem:[#allocation2 + $0x98] sm:$0xff] %vm278, 0.0
        %300 = vst.msk [vmem:[#allocation2 + $0xa0] sm:$0x3] %vm281, 0.0
        %301 = vst.msk [vmem:[#allocation2 + $0xa8] sm:$0xff] %vm278, 0.0
        %302 = vst.msk [vmem:[#allocation2 + $0xb0] sm:$0xff] %vm278, 0.0
        %303 = vst.msk [vmem:[#allocation2 + $0xb8] sm:$0x3] %vm281, 0.0
        %304 = vst.msk [vmem:[#allocation2 + $0xc0] sm:$0xff] %vm278, 0.0
        %305 = vst.msk [vmem:[#allocation2 + $0xc8] sm:$0xff] %vm278, 0.0
        %306 = vst.msk [vmem:[#allocation2 + $0xd0] sm:$0x3] %vm281, 0.0
        %307 = vst.msk [vmem:[#allocation2 + $0xd8] sm:$0xff] %vm278, 0.0
        %308 = vst.msk [vmem:[#allocation2 + $0xe0] sm:$0xff] %vm278, 0.0
        %309 = vst.msk [vmem:[#allocation2 + $0xe8] sm:$0x3] %vm281, 0.0
        %v310 = vld [vmem:[%s265] sm:$0xff]
        %v311 = vld [vmem:[%s265 + $0x8] sm:$0xff]
        %v312 = vld [vmem:[%s265 + $0x10] sm:$0xff]
        %v313 = vld [vmem:[%s265 + $0x18] sm:$0xff]
        %v314 = vld [vmem:[%s265 + $0x20] sm:$0xff]
        %v315 = vld [vmem:[%s265 + $0x28] sm:$0xff]
        %v316 = vld [vmem:[%s265 + $0x30] sm:$0xff]
        %v317 = vld [vmem:[%s265 + $0x38] sm:$0xff]
        %v318 = vld [vmem:[%s265 + $0x40] sm:$0xff]
        %v319 = vld [vmem:[%s265 + $0x48] sm:$0xff]
        %v320 = vld [vmem:[%s265 + $0x50] sm:$0xff]
        %v321 = vld [vmem:[%s265 + $0x58] sm:$0xff]
        %v322 = vld [vmem:[%s265 + $0x60] sm:$0xff]
        %v323 = vld [vmem:[%s265 + $0x68] sm:$0xff]
        %v324 = vld [vmem:[%s265 + $0x70] sm:$0xff]
        %v325 = vld [vmem:[%s265 + $0x78] sm:$0xff]
        %s326 = scalar_lea.vmem [#allocation2], 24
        %vm327 = vcmask 31744
        %328 = vst.msk [vmem:[%s326 + $0x1] sm:$0xff] %vm327, %v310
        %329 = vst.msk [vmem:[%s326 + $0x9] sm:$0xff] %vm327, %v311
        %330 = vst.msk [vmem:[%s326 + $0x19] sm:$0xff] %vm327, %v312
        %331 = vst.msk [vmem:[%s326 + $0x21] sm:$0xff] %vm327, %v313
        %332 = vst.msk [vmem:[%s326 + $0x31] sm:$0xff] %vm327, %v314
        %333 = vst.msk [vmem:[%s326 + $0x39] sm:$0xff] %vm327, %v315
        %334 = vst.msk [vmem:[%s326 + $0x49] sm:$0xff] %vm327, %v316
        %335 = vst.msk [vmem:[%s326 + $0x51] sm:$0xff] %vm327, %v317
        %336 = vst.msk [vmem:[%s326 + $0x61] sm:$0xff] %vm327, %v318
        %337 = vst.msk [vmem:[%s326 + $0x69] sm:$0xff] %vm327, %v319
        %338 = vst.msk [vmem:[%s326 + $0x79] sm:$0xff] %vm327, %v320
        %339 = vst.msk [vmem:[%s326 + $0x81] sm:$0xff] %vm327, %v321
        %340 = vst.msk [vmem:[%s326 + $0x91] sm:$0xff] %vm327, %v322
        %341 = vst.msk [vmem:[%s326 + $0x99] sm:$0xff] %vm327, %v323
        %342 = vst.msk [vmem:[%s326 + $0xa9] sm:$0xff] %vm327, %v324
        %343 = vst.msk [vmem:[%s326 + $0xb1] sm:$0xff] %vm327, %v325
        %p344 = scmp.gt.s32.totalorder %s27, 0
        // Predicated region
        $region33: #{tpu_custom_call.1} parent=31 // pred_check
          %p345 = pneg %p344
        $region34: #{tpu_custom_call.1} parent=31 // pred_check_branch
          %347 = sbr.rel (%p345) target = $region36
        $region35: #{tpu_custom_call.1} parent=31 // pred_region
          %v348 = vld [vmem:[%s275] sm:$0xff]
          %v349 = vld [vmem:[%s275 + $0x8] sm:$0xff]
          %350 = vst.msk [vmem:[#allocation2 + $0x1] sm:$0xff] %vm327, %v348
          %351 = vst.msk [vmem:[#allocation2 + $0x9] sm:$0xff] %vm327, %v349
        $region36: #{tpu_custom_call.1} parent=31 // pred_fallthru
          _
        %p352 = scmp.lt.s32.totalorder %s27, 1
        // Predicated region
        $region37: #{tpu_custom_call.1} parent=31 // pred_check
          %p353 = pneg %p352
        $region38: #{tpu_custom_call.1} parent=31 // pred_check_branch
          %355 = sbr.rel (%p353) target = $region40
        $region39: #{tpu_custom_call.1} parent=31 // pred_region
          %s356 = scalar_lea.vmem %s275, 16
          %v357 = vld [vmem:[%s356] sm:$0xff]
          %v358 = vld [vmem:[%s356 + $0x8] sm:$0xff]
          %s359 = scalar_lea.vmem [#allocation2], 216
          %360 = vst.msk [vmem:[%s359 + $0x1] sm:$0xff] %vm327, %v357
          %361 = vst.msk [vmem:[%s359 + $0x9] sm:$0xff] %vm327, %v358
        $region40: #{tpu_custom_call.1} parent=31 // pred_fallthru
          _
        %v362 = vld [vmem:[#allocation2] sm:$0xff]
        %v363 = vld [vmem:[#allocation2 + $0x8] sm:$0xff]
        %v364 = vld [vmem:[#allocation2 + $0x18] sm:$0xff]
        %v365 = vld [vmem:[#allocation2 + $0x20] sm:$0xff]
        %v366 = vld [vmem:[#allocation2 + $0x30] sm:$0xff]
        %v367 = vld [vmem:[#allocation2 + $0x38] sm:$0xff]
        %v368 = vld [vmem:[#allocation2 + $0x48] sm:$0xff]
        %v369 = vld [vmem:[#allocation2 + $0x50] sm:$0xff]
        %v370 = vld [vmem:[#allocation2 + $0x60] sm:$0xff]
        %v371 = vld [vmem:[#allocation2 + $0x68] sm:$0xff]
        %v372 = vld [vmem:[#allocation2 + $0x78] sm:$0xff]
        %v373 = vld [vmem:[#allocation2 + $0x80] sm:$0xff]
        %v374 = vld [vmem:[#allocation2 + $0x90] sm:$0xff]
        %v375 = vld [vmem:[#allocation2 + $0x98] sm:$0xff]
        %v376 = vld [vmem:[#allocation2 + $0xa8] sm:$0xff]
        %v377 = vld [vmem:[#allocation2 + $0xb0] sm:$0xff]
        %v378 = vpack.c.bf16 %v363, %v362
        %v379 = vpack.c.bf16 %v365, %v364
        %v380 = vpack.c.bf16 %v367, %v366
        %v381 = vpack.c.bf16 %v369, %v368
        %v382 = vpack.c.bf16 %v371, %v370
        %v383 = vpack.c.bf16 %v373, %v372
        %v384 = vpack.c.bf16 %v375, %v374
        %v385 = vpack.c.bf16 %v377, %v376
        %v386 = vld [vmem:[#allocation2 + $0x1] sm:$0xff]
        %v387 = vld [vmem:[#allocation2 + $0x9] sm:$0xff]
        %v388 = vld [vmem:[#allocation2 + $0x19] sm:$0xff]
        %v389 = vld [vmem:[#allocation2 + $0x21] sm:$0xff]
        %v390 = vld [vmem:[#allocation2 + $0x31] sm:$0xff]
        %v391 = vld [vmem:[#allocation2 + $0x39] sm:$0xff]
        %v392 = vld [vmem:[#allocation2 + $0x49] sm:$0xff]
        %v393 = vld [vmem:[#allocation2 + $0x51] sm:$0xff]
        %v394 = vld [vmem:[#allocation2 + $0x61] sm:$0xff]
        %v395 = vld [vmem:[#allocation2 + $0x69] sm:$0xff]
        %v396 = vld [vmem:[#allocation2 + $0x79] sm:$0xff]
        %v397 = vld [vmem:[#allocation2 + $0x81] sm:$0xff]
        %v398 = vld [vmem:[#allocation2 + $0x91] sm:$0xff]
        %v399 = vld [vmem:[#allocation2 + $0x99] sm:$0xff]
        %v400 = vld [vmem:[#allocation2 + $0xa9] sm:$0xff]
        %v401 = vld [vmem:[#allocation2 + $0xb1] sm:$0xff]
        %v402 = vpack.c.bf16 %v387, %v386
        %v403 = vpack.c.bf16 %v389, %v388
        %v404 = vpack.c.bf16 %v391, %v390
        %v405 = vpack.c.bf16 %v393, %v392
        %v406 = vpack.c.bf16 %v395, %v394
        %v407 = vpack.c.bf16 %v397, %v396
        %v408 = vpack.c.bf16 %v399, %v398
        %v409 = vpack.c.bf16 %v401, %v400
        %v410 = vld [vmem:[#allocation2 + $0x2] sm:$0xff]
        %v411 = vld [vmem:[#allocation2 + $0xa] sm:$0xff]
        %v412 = vld [vmem:[#allocation2 + $0x1a] sm:$0xff]
        %v413 = vld [vmem:[#allocation2 + $0x22] sm:$0xff]
        %v414 = vld [vmem:[#allocation2 + $0x32] sm:$0xff]
        %v415 = vld [vmem:[#allocation2 + $0x3a] sm:$0xff]
        %v416 = vld [vmem:[#allocation2 + $0x4a] sm:$0xff]
        %v417 = vld [vmem:[#allocation2 + $0x52] sm:$0xff]
        %v418 = vld [vmem:[#allocation2 + $0x62] sm:$0xff]
        %v419 = vld [vmem:[#allocation2 + $0x6a] sm:$0xff]
        %v420 = vld [vmem:[#allocation2 + $0x7a] sm:$0xff]
        %v421 = vld [vmem:[#allocation2 + $0x82] sm:$0xff]
        %v422 = vld [vmem:[#allocation2 + $0x92] sm:$0xff]
        %v423 = vld [vmem:[#allocation2 + $0x9a] sm:$0xff]
        %v424 = vld [vmem:[#allocation2 + $0xaa] sm:$0xff]
        %v425 = vld [vmem:[#allocation2 + $0xb2] sm:$0xff]
        %v426 = vpack.c.bf16 %v411, %v410
        %v427 = vpack.c.bf16 %v413, %v412
        %v428 = vpack.c.bf16 %v415, %v414
        %v429 = vpack.c.bf16 %v417, %v416
        %v430 = vpack.c.bf16 %v419, %v418
        %v431 = vpack.c.bf16 %v421, %v420
        %v432 = vpack.c.bf16 %v423, %v422
        %v433 = vpack.c.bf16 %v425, %v424
        %v434 = vld [vmem:[%s326] sm:$0xff]
        %v435 = vld [vmem:[%s326 + $0x8] sm:$0xff]
        %v436 = vld [vmem:[%s326 + $0x18] sm:$0xff]
        %v437 = vld [vmem:[%s326 + $0x20] sm:$0xff]
        %v438 = vld [vmem:[%s326 + $0x30] sm:$0xff]
        %v439 = vld [vmem:[%s326 + $0x38] sm:$0xff]
        %v440 = vld [vmem:[%s326 + $0x48] sm:$0xff]
        %v441 = vld [vmem:[%s326 + $0x50] sm:$0xff]
        %v442 = vld [vmem:[%s326 + $0x60] sm:$0xff]
        %v443 = vld [vmem:[%s326 + $0x68] sm:$0xff]
        %v444 = vld [vmem:[%s326 + $0x78] sm:$0xff]
        %v445 = vld [vmem:[%s326 + $0x80] sm:$0xff]
        %v446 = vld [vmem:[%s326 + $0x90] sm:$0xff]
        %v447 = vld [vmem:[%s326 + $0x98] sm:$0xff]
        %v448 = vld [vmem:[%s326 + $0xa8] sm:$0xff]
        %v449 = vld [vmem:[%s326 + $0xb0] sm:$0xff]
        %v450 = vpack.c.bf16 %v435, %v434
        %v451 = vpack.c.bf16 %v437, %v436
        %v452 = vpack.c.bf16 %v439, %v438
        %v453 = vpack.c.bf16 %v441, %v440
        %v454 = vpack.c.bf16 %v443, %v442
        %v455 = vpack.c.bf16 %v445, %v444
        %v456 = vpack.c.bf16 %v447, %v446
        %v457 = vpack.c.bf16 %v449, %v448
        %v458 = vld [vmem:[%s326 + $0x1] sm:$0xff]
        %v459 = vld [vmem:[%s326 + $0x9] sm:$0xff]
        %v460 = vld [vmem:[%s326 + $0x19] sm:$0xff]
        %v461 = vld [vmem:[%s326 + $0x21] sm:$0xff]
        %v462 = vld [vmem:[%s326 + $0x31] sm:$0xff]
        %v463 = vld [vmem:[%s326 + $0x39] sm:$0xff]
        %v464 = vld [vmem:[%s326 + $0x49] sm:$0xff]
        %v465 = vld [vmem:[%s326 + $0x51] sm:$0xff]
        %v466 = vld [vmem:[%s326 + $0x61] sm:$0xff]
        %v467 = vld [vmem:[%s326 + $0x69] sm:$0xff]
        %v468 = vld [vmem:[%s326 + $0x79] sm:$0xff]
        %v469 = vld [vmem:[%s326 + $0x81] sm:$0xff]
        %v470 = vld [vmem:[%s326 + $0x91] sm:$0xff]
        %v471 = vld [vmem:[%s326 + $0x99] sm:$0xff]
        %v472 = vld [vmem:[%s326 + $0xa9] sm:$0xff]
        %v473 = vld [vmem:[%s326 + $0xb1] sm:$0xff]
        %v474 = vpack.c.bf16 %v459, %v458
        %v475 = vpack.c.bf16 %v461, %v460
        %v476 = vpack.c.bf16 %v463, %v462
        %v477 = vpack.c.bf16 %v465, %v464
        %v478 = vpack.c.bf16 %v467, %v466
        %v479 = vpack.c.bf16 %v469, %v468
        %v480 = vpack.c.bf16 %v471, %v470
        %v481 = vpack.c.bf16 %v473, %v472
        %v482 = vld [vmem:[%s326 + $0x2] sm:$0xff]
        %v483 = vld [vmem:[%s326 + $0xa] sm:$0xff]
        %v484 = vld [vmem:[%s326 + $0x1a] sm:$0xff]
        %v485 = vld [vmem:[%s326 + $0x22] sm:$0xff]
        %v486 = vld [vmem:[%s326 + $0x32] sm:$0xff]
        %v487 = vld [vmem:[%s326 + $0x3a] sm:$0xff]
        %v488 = vld [vmem:[%s326 + $0x4a] sm:$0xff]
        %v489 = vld [vmem:[%s326 + $0x52] sm:$0xff]
        %v490 = vld [vmem:[%s326 + $0x62] sm:$0xff]
        %v491 = vld [vmem:[%s326 + $0x6a] sm:$0xff]
        %v492 = vld [vmem:[%s326 + $0x7a] sm:$0xff]
        %v493 = vld [vmem:[%s326 + $0x82] sm:$0xff]
        %v494 = vld [vmem:[%s326 + $0x92] sm:$0xff]
        %v495 = vld [vmem:[%s326 + $0x9a] sm:$0xff]
        %v496 = vld [vmem:[%s326 + $0xaa] sm:$0xff]
        %v497 = vld [vmem:[%s326 + $0xb2] sm:$0xff]
        %v498 = vpack.c.bf16 %v483, %v482
        %v499 = vpack.c.bf16 %v485, %v484
        %v500 = vpack.c.bf16 %v487, %v486
        %v501 = vpack.c.bf16 %v489, %v488
        %v502 = vpack.c.bf16 %v491, %v490
        %v503 = vpack.c.bf16 %v493, %v492
        %v504 = vpack.c.bf16 %v495, %v494
        %v505 = vpack.c.bf16 %v497, %v496
        %s506 = scalar_lea.vmem [#allocation2], 48
        %v507 = vld [vmem:[%s506] sm:$0xff]
        %v508 = vld [vmem:[%s506 + $0x8] sm:$0xff]
        %v509 = vld [vmem:[%s506 + $0x18] sm:$0xff]
        %v510 = vld [vmem:[%s506 + $0x20] sm:$0xff]
        %v511 = vld [vmem:[%s506 + $0x30] sm:$0xff]
        %v512 = vld [vmem:[%s506 + $0x38] sm:$0xff]
        %v513 = vld [vmem:[%s506 + $0x48] sm:$0xff]
        %v514 = vld [vmem:[%s506 + $0x50] sm:$0xff]
        %v515 = vld [vmem:[%s506 + $0x60] sm:$0xff]
        %v516 = vld [vmem:[%s506 + $0x68] sm:$0xff]
        %v517 = vld [vmem:[%s506 + $0x78] sm:$0xff]
        %v518 = vld [vmem:[%s506 + $0x80] sm:$0xff]
        %v519 = vld [vmem:[%s506 + $0x90] sm:$0xff]
        %v520 = vld [vmem:[%s506 + $0x98] sm:$0xff]
        %v521 = vld [vmem:[%s506 + $0xa8] sm:$0xff]
        %v522 = vld [vmem:[%s506 + $0xb0] sm:$0xff]
        %v523 = vpack.c.bf16 %v508, %v507
        %v524 = vpack.c.bf16 %v510, %v509
        %v525 = vpack.c.bf16 %v512, %v511
        %v526 = vpack.c.bf16 %v514, %v513
        %v527 = vpack.c.bf16 %v516, %v515
        %v528 = vpack.c.bf16 %v518, %v517
        %v529 = vpack.c.bf16 %v520, %v519
        %v530 = vpack.c.bf16 %v522, %v521
        %v531 = vld [vmem:[%s506 + $0x1] sm:$0xff]
        %v532 = vld [vmem:[%s506 + $0x9] sm:$0xff]
        %v533 = vld [vmem:[%s506 + $0x19] sm:$0xff]
        %v534 = vld [vmem:[%s506 + $0x21] sm:$0xff]
        %v535 = vld [vmem:[%s506 + $0x31] sm:$0xff]
        %v536 = vld [vmem:[%s506 + $0x39] sm:$0xff]
        %v537 = vld [vmem:[%s506 + $0x49] sm:$0xff]
        %v538 = vld [vmem:[%s506 + $0x51] sm:$0xff]
        %v539 = vld [vmem:[%s506 + $0x61] sm:$0xff]
        %v540 = vld [vmem:[%s506 + $0x69] sm:$0xff]
        %v541 = vld [vmem:[%s506 + $0x79] sm:$0xff]
        %v542 = vld [vmem:[%s506 + $0x81] sm:$0xff]
        %v543 = vld [vmem:[%s506 + $0x91] sm:$0xff]
        %v544 = vld [vmem:[%s506 + $0x99] sm:$0xff]
        %v545 = vld [vmem:[%s506 + $0xa9] sm:$0xff]
        %v546 = vld [vmem:[%s506 + $0xb1] sm:$0xff]
        %v547 = vpack.c.bf16 %v532, %v531
        %v548 = vpack.c.bf16 %v534, %v533
        %v549 = vpack.c.bf16 %v536, %v535
        %v550 = vpack.c.bf16 %v538, %v537
        %v551 = vpack.c.bf16 %v540, %v539
        %v552 = vpack.c.bf16 %v542, %v541
        %v553 = vpack.c.bf16 %v544, %v543
        %v554 = vpack.c.bf16 %v546, %v545
        %v555 = vld [vmem:[%s506 + $0x2] sm:$0xff]
        %v556 = vld [vmem:[%s506 + $0xa] sm:$0xff]
        %v557 = vld [vmem:[%s506 + $0x1a] sm:$0xff]
        %v558 = vld [vmem:[%s506 + $0x22] sm:$0xff]
        %v559 = vld [vmem:[%s506 + $0x32] sm:$0xff]
        %v560 = vld [vmem:[%s506 + $0x3a] sm:$0xff]
        %v561 = vld [vmem:[%s506 + $0x4a] sm:$0xff]
        %v562 = vld [vmem:[%s506 + $0x52] sm:$0xff]
        %v563 = vld [vmem:[%s506 + $0x62] sm:$0xff]
        %v564 = vld [vmem:[%s506 + $0x6a] sm:$0xff]
        %v565 = vld [vmem:[%s506 + $0x7a] sm:$0xff]
        %v566 = vld [vmem:[%s506 + $0x82] sm:$0xff]
        %v567 = vld [vmem:[%s506 + $0x92] sm:$0xff]
        %v568 = vld [vmem:[%s506 + $0x9a] sm:$0xff]
        %v569 = vld [vmem:[%s506 + $0xaa] sm:$0xff]
        %v570 = vld [vmem:[%s506 + $0xb2] sm:$0xff]
        %v571 = vpack.c.bf16 %v556, %v555
        %v572 = vpack.c.bf16 %v558, %v557
        %v573 = vpack.c.bf16 %v560, %v559
        %v574 = vpack.c.bf16 %v562, %v561
        %v575 = vpack.c.bf16 %v564, %v563
        %v576 = vpack.c.bf16 %v566, %v565
        %v577 = vpack.c.bf16 %v568, %v567
        %v578 = vpack.c.bf16 %v570, %v569
        %587 = vrot.lane.b32.xlu0 %v402, 8
        %v588 = vpop.permute.xlu0 %587
        %589 = vrot.lane.b32.xlu0 %v403, 8
        %v590 = vpop.permute.xlu0 %589
        %591 = vrot.lane.b32.xlu0 %v404, 8
        %v592 = vpop.permute.xlu0 %591
        %593 = vrot.lane.b32.xlu0 %v405, 8
        %v594 = vpop.permute.xlu0 %593
        %595 = vrot.lane.b32.xlu0 %v406, 8
        %v596 = vpop.permute.xlu0 %595
        %597 = vrot.lane.b32.xlu0 %v407, 8
        %v598 = vpop.permute.xlu0 %597
        %599 = vrot.lane.b32.xlu0 %v408, 8
        %v600 = vpop.permute.xlu0 %599
        %601 = vrot.lane.b32.xlu0 %v409, 8
        %v602 = vpop.permute.xlu0 %601
        %611 = vrot.lane.b32.xlu0 %v426, 16
        %v612 = vpop.permute.xlu0 %611
        %613 = vrot.lane.b32.xlu0 %v427, 16
        %v614 = vpop.permute.xlu0 %613
        %615 = vrot.lane.b32.xlu0 %v428, 16
        %v616 = vpop.permute.xlu0 %615
        %617 = vrot.lane.b32.xlu0 %v429, 16
        %v618 = vpop.permute.xlu0 %617
        %619 = vrot.lane.b32.xlu0 %v430, 16
        %v620 = vpop.permute.xlu0 %619
        %621 = vrot.lane.b32.xlu0 %v431, 16
        %v622 = vpop.permute.xlu0 %621
        %623 = vrot.lane.b32.xlu0 %v432, 16
        %v624 = vpop.permute.xlu0 %623
        %625 = vrot.lane.b32.xlu0 %v433, 16
        %v626 = vpop.permute.xlu0 %625
        %635 = vrot.lane.b32.xlu0 %v450, 24
        %v636 = vpop.permute.xlu0 %635
        %637 = vrot.lane.b32.xlu0 %v451, 24
        %v638 = vpop.permute.xlu0 %637
        %639 = vrot.lane.b32.xlu0 %v452, 24
        %v640 = vpop.permute.xlu0 %639
        %641 = vrot.lane.b32.xlu0 %v453, 24
        %v642 = vpop.permute.xlu0 %641
        %643 = vrot.lane.b32.xlu0 %v454, 24
        %v644 = vpop.permute.xlu0 %643
        %645 = vrot.lane.b32.xlu0 %v455, 24
        %v646 = vpop.permute.xlu0 %645
        %647 = vrot.lane.b32.xlu0 %v456, 24
        %v648 = vpop.permute.xlu0 %647
        %649 = vrot.lane.b32.xlu0 %v457, 24
        %v650 = vpop.permute.xlu0 %649
        %659 = vrot.lane.b32.xlu0 %v474, 32
        %v660 = vpop.permute.xlu0 %659
        %661 = vrot.lane.b32.xlu0 %v475, 32
        %v662 = vpop.permute.xlu0 %661
        %663 = vrot.lane.b32.xlu0 %v476, 32
        %v664 = vpop.permute.xlu0 %663
        %665 = vrot.lane.b32.xlu0 %v477, 32
        %v666 = vpop.permute.xlu0 %665
        %667 = vrot.lane.b32.xlu0 %v478, 32
        %v668 = vpop.permute.xlu0 %667
        %669 = vrot.lane.b32.xlu0 %v479, 32
        %v670 = vpop.permute.xlu0 %669
        %671 = vrot.lane.b32.xlu0 %v480, 32
        %v672 = vpop.permute.xlu0 %671
        %673 = vrot.lane.b32.xlu0 %v481, 32
        %v674 = vpop.permute.xlu0 %673
        %683 = vrot.lane.b32.xlu0 %v498, 40
        %v684 = vpop.permute.xlu0 %683
        %685 = vrot.lane.b32.xlu0 %v499, 40
        %v686 = vpop.permute.xlu0 %685
        %687 = vrot.lane.b32.xlu0 %v500, 40
        %v688 = vpop.permute.xlu0 %687
        %689 = vrot.lane.b32.xlu0 %v501, 40
        %v690 = vpop.permute.xlu0 %689
        %691 = vrot.lane.b32.xlu0 %v502, 40
        %v692 = vpop.permute.xlu0 %691
        %693 = vrot.lane.b32.xlu0 %v503, 40
        %v694 = vpop.permute.xlu0 %693
        %695 = vrot.lane.b32.xlu0 %v504, 40
        %v696 = vpop.permute.xlu0 %695
        %697 = vrot.lane.b32.xlu0 %v505, 40
        %v698 = vpop.permute.xlu0 %697
        %707 = vrot.lane.b32.xlu0 %v523, 48
        %v708 = vpop.permute.xlu0 %707
        %709 = vrot.lane.b32.xlu0 %v524, 48
        %v710 = vpop.permute.xlu0 %709
        %711 = vrot.lane.b32.xlu0 %v525, 48
        %v712 = vpop.permute.xlu0 %711
        %713 = vrot.lane.b32.xlu0 %v526, 48
        %v714 = vpop.permute.xlu0 %713
        %715 = vrot.lane.b32.xlu0 %v527, 48
        %v716 = vpop.permute.xlu0 %715
        %717 = vrot.lane.b32.xlu0 %v528, 48
        %v718 = vpop.permute.xlu0 %717
        %719 = vrot.lane.b32.xlu0 %v529, 48
        %v720 = vpop.permute.xlu0 %719
        %721 = vrot.lane.b32.xlu0 %v530, 48
        %v722 = vpop.permute.xlu0 %721
        %731 = vrot.lane.b32.xlu0 %v547, 56
        %v732 = vpop.permute.xlu0 %731
        %733 = vrot.lane.b32.xlu0 %v548, 56
        %v734 = vpop.permute.xlu0 %733
        %735 = vrot.lane.b32.xlu0 %v549, 56
        %v736 = vpop.permute.xlu0 %735
        %737 = vrot.lane.b32.xlu0 %v550, 56
        %v738 = vpop.permute.xlu0 %737
        %739 = vrot.lane.b32.xlu0 %v551, 56
        %v740 = vpop.permute.xlu0 %739
        %741 = vrot.lane.b32.xlu0 %v552, 56
        %v742 = vpop.permute.xlu0 %741
        %743 = vrot.lane.b32.xlu0 %v553, 56
        %v744 = vpop.permute.xlu0 %743
        %745 = vrot.lane.b32.xlu0 %v554, 56
        %v746 = vpop.permute.xlu0 %745
        %755 = vrot.lane.b32.xlu0 %v571, 64
        %v756 = vpop.permute.xlu0 %755
        %757 = vrot.lane.b32.xlu0 %v572, 64
        %v758 = vpop.permute.xlu0 %757
        %759 = vrot.lane.b32.xlu0 %v573, 64
        %v760 = vpop.permute.xlu0 %759
        %761 = vrot.lane.b32.xlu0 %v574, 64
        %v762 = vpop.permute.xlu0 %761
        %763 = vrot.lane.b32.xlu0 %v575, 64
        %v764 = vpop.permute.xlu0 %763
        %765 = vrot.lane.b32.xlu0 %v576, 64
        %v766 = vpop.permute.xlu0 %765
        %767 = vrot.lane.b32.xlu0 %v577, 64
        %v768 = vpop.permute.xlu0 %767
        %769 = vrot.lane.b32.xlu0 %v578, 64
        %v770 = vpop.permute.xlu0 %769
        %v773 = vsel %vm278, %v378, %v588
        %v776 = vsel %vm278, %v379, %v590
        %v779 = vsel %vm278, %v380, %v592
        %v782 = vsel %vm278, %v381, %v594
        %v785 = vsel %vm278, %v382, %v596
        %v788 = vsel %vm278, %v383, %v598
        %v791 = vsel %vm278, %v384, %v600
        %v794 = vsel %vm278, %v385, %v602
        %vm795 = vcmask 130048
        %v797 = vsel %vm795, %v773, %v612
        %v799 = vsel %vm795, %v776, %v614
        %v801 = vsel %vm795, %v779, %v616
        %v803 = vsel %vm795, %v782, %v618
        %v805 = vsel %vm795, %v785, %v620
        %v807 = vsel %vm795, %v788, %v622
        %v809 = vsel %vm795, %v791, %v624
        %v811 = vsel %vm795, %v794, %v626
        %vm812 = vcmask 195584
        %v814 = vsel %vm812, %v797, %v636
        %v816 = vsel %vm812, %v799, %v638
        %v818 = vsel %vm812, %v801, %v640
        %v820 = vsel %vm812, %v803, %v642
        %v822 = vsel %vm812, %v805, %v644
        %v824 = vsel %vm812, %v807, %v646
        %v826 = vsel %vm812, %v809, %v648
        %v828 = vsel %vm812, %v811, %v650
        %vm829 = vcmask 261120
        %v831 = vsel %vm829, %v814, %v660
        %v833 = vsel %vm829, %v816, %v662
        %v835 = vsel %vm829, %v818, %v664
        %v837 = vsel %vm829, %v820, %v666
        %v839 = vsel %vm829, %v822, %v668
        %v841 = vsel %vm829, %v824, %v670
        %v843 = vsel %vm829, %v826, %v672
        %v845 = vsel %vm829, %v828, %v674
        %vm846 = vcmask 326656
        %v848 = vsel %vm846, %v831, %v684
        %v850 = vsel %vm846, %v833, %v686
        %v852 = vsel %vm846, %v835, %v688
        %v854 = vsel %vm846, %v837, %v690
        %v856 = vsel %vm846, %v839, %v692
        %v858 = vsel %vm846, %v841, %v694
        %v860 = vsel %vm846, %v843, %v696
        %v862 = vsel %vm846, %v845, %v698
        %vm863 = vcmask 392192
        %v865 = vsel %vm863, %v848, %v708
        %v867 = vsel %vm863, %v850, %v710
        %v869 = vsel %vm863, %v852, %v712
        %v871 = vsel %vm863, %v854, %v714
        %v873 = vsel %vm863, %v856, %v716
        %v875 = vsel %vm863, %v858, %v718
        %v877 = vsel %vm863, %v860, %v720
        %v879 = vsel %vm863, %v862, %v722
        %vm880 = vcmask 457728
        %v882 = vsel %vm880, %v865, %v732
        %v884 = vsel %vm880, %v867, %v734
        %v886 = vsel %vm880, %v869, %v736
        %v888 = vsel %vm880, %v871, %v738
        %v890 = vsel %vm880, %v873, %v740
        %v892 = vsel %vm880, %v875, %v742
        %v894 = vsel %vm880, %v877, %v744
        %v896 = vsel %vm880, %v879, %v746
        %vm897 = vcmask 523264
        %v899 = vsel %vm897, %v882, %v756
        %v901 = vsel %vm897, %v884, %v758
        %v903 = vsel %vm897, %v886, %v760
        %v905 = vsel %vm897, %v888, %v762
        %v907 = vsel %vm897, %v890, %v764
        %v909 = vsel %vm897, %v892, %v766
        %v911 = vsel %vm897, %v894, %v768
        %v913 = vsel %vm897, %v896, %v770
        %v914 = vld [vmem:[%s2] sm:$0xf]
        %v915 = vld [vmem:[%s2 + $0x4] sm:$0xf]
        %v916 = vld [vmem:[%s2 + $0x8] sm:$0xf]
        %v917 = vld [vmem:[%s2 + $0xc] sm:$0xf]
        %v918 = vld [vmem:[%s2 + $0x10] sm:$0xf]
        %v919 = vld [vmem:[%s2 + $0x14] sm:$0xf]
        %v920 = vld [vmem:[%s2 + $0x18] sm:$0xf]
        %v921 = vld [vmem:[%s2 + $0x1c] sm:$0xf]
        %v922 = vld [vmem:[%s2 + $0x20] sm:$0xf]
        %v932 = vunpack.c.l.b16 %v914
        %v933 = vunpack.c.l.b16 %v915
        %v934 = vunpack.c.l.b16 %v916
        %v935 = vunpack.c.l.b16 %v917
        %v936 = vunpack.c.l.b16 %v918
        %v937 = vunpack.c.l.b16 %v919
        %v938 = vunpack.c.l.b16 %v920
        %v939 = vunpack.c.l.b16 %v921
        %v940 = vunpack.c.l.b16 %v922
        %v941 = vpack.c.b16 %v933, %v932
        %v942 = vpack.c.b16 %v935, %v934
        %v943 = vpack.c.b16 %v937, %v936
        %v944 = vpack.c.b16 %v939, %v938
        %v945 = vpack.c.b16 %v940, %v940
        %vm950 = vcmask 588800
        %v951 = vsel %vm950, %v899, 0
        %v953 = vsel %vm950, %v901, 0
        %v955 = vsel %vm950, %v903, 0
        %v957 = vsel %vm950, %v905, 0
        %v959 = vsel %vm950, %v907, 0
        %v961 = vsel %vm950, %v909, 0
        %v963 = vsel %vm950, %v911, 0
        %v965 = vsel %vm950, %v913, 0
        %vm967 = vcmask 1043456
        %v969 = vsel %vm967, %v945, 0
        %971 = vmatprep.subr.bf16.mxu0 0
        %972 = vmatpush1.bf16.msra.mxu0 %v941
        %973 = vmatprep.subr.bf16.mxu0 0
        %974 = vmatpush1.bf16.msra.mxu0 %v942
        %975 = vmatprep.subr.bf16.mxu0 0
        %976 = vmatpush1.bf16.msra.mxu0 %v943
        %977 = vmatprep.subr.bf16.mxu0 0
        %978 = vmatpush1.bf16.msra.mxu0 %v944
        %979 = vmatprep.subr.bf16.mxu0 0
        %980 = vmatpush1.bf16.msra.mxu0 %v969
        %981 = vmatprep.subr.bf16.mxu0 0
        %982 = vmatpush1.bf16.msra.mxu0 0
        %983 = vmatprep.subr.bf16.mxu0 0
        %984 = vmatpush1.bf16.msra.mxu0 0
        %985 = vmatprep.subr.bf16.mxu0 0
        %986 = vmatpush1.bf16.msra.mxu0 0
        %987 = vmatprep.subr.bf16.mxu0 0
        %988 = vmatpush1.bf16.msra.mxu0 0
        %989 = vmatprep.subr.bf16.mxu0 0
        %990 = vmatpush1.bf16.msra.mxu0 0
        %991 = vmatprep.subr.bf16.mxu0 0
        %992 = vmatpush1.bf16.msra.mxu0 0
        %993 = vmatprep.subr.bf16.mxu0 0
        %994 = vmatpush1.bf16.msra.mxu0 0
        %995 = vmatprep.subr.bf16.mxu0 0
        %996 = vmatpush1.bf16.msra.mxu0 0
        %997 = vmatprep.subr.bf16.mxu0 0
        %998 = vmatpush1.bf16.msra.mxu0 0
        %999 = vmatprep.subr.bf16.mxu0 0
        %1000 = vmatpush1.bf16.msra.mxu0 0
        %1001 = vmatprep.subr.bf16.mxu0 0
        %1002 = vmatpush1.bf16.msra.mxu0 0
        %1003 = vmatprep.mubr.bf16.mxu0 0
        %1004 = vmatmul.mubr.bf16.gmra.mrb[0].mxu0 %v951
        %v1005 = vpop.f32.mrb[0].mxu0
        %v1006 = vadd.f32 0.0, %v1005
        %v1007 = vpop.f32.mrb[0].mxu0
        %v1008 = vpop.f32.mrb[0].mxu0
        %v1009 = vadd.f32 0.0, %v1008
        %v1010 = vpop.f32.mrb[0].mxu0
        %1011 = vmatprep.mubr.bf16.mxu0 0
        %1012 = vmatmul.mubr.bf16.gmra.mrb[0].mxu0 %v953
        %v1013 = vpop.f32.mrb[0].mxu0
        %v1014 = vadd.f32 0.0, %v1013
        %v1015 = vpop.f32.mrb[0].mxu0
        %v1016 = vpop.f32.mrb[0].mxu0
        %v1017 = vadd.f32 0.0, %v1016
        %v1018 = vpop.f32.mrb[0].mxu0
        %1019 = vmatprep.mubr.bf16.mxu0 0
        %1020 = vmatmul.mubr.bf16.gmra.mrb[0].mxu0 %v955
        %v1021 = vpop.f32.mrb[0].mxu0
        %v1022 = vadd.f32 0.0, %v1021
        %v1023 = vpop.f32.mrb[0].mxu0
        %v1024 = vpop.f32.mrb[0].mxu0
        %v1025 = vadd.f32 0.0, %v1024
        %v1026 = vpop.f32.mrb[0].mxu0
        %1027 = vmatprep.mubr.bf16.mxu0 0
        %1028 = vmatmul.mubr.bf16.gmra.mrb[0].mxu0 %v957
        %v1029 = vpop.f32.mrb[0].mxu0
        %v1030 = vadd.f32 0.0, %v1029
        %v1031 = vpop.f32.mrb[0].mxu0
        %v1032 = vpop.f32.mrb[0].mxu0
        %v1033 = vadd.f32 0.0, %v1032
        %v1034 = vpop.f32.mrb[0].mxu0
        %1035 = vmatprep.mubr.bf16.mxu0 0
        %1036 = vmatmul.mubr.bf16.gmra.mrb[0].mxu0 %v959
        %v1037 = vpop.f32.mrb[0].mxu0
        %v1038 = vadd.f32 0.0, %v1037
        %v1039 = vpop.f32.mrb[0].mxu0
        %v1040 = vpop.f32.mrb[0].mxu0
        %v1041 = vadd.f32 0.0, %v1040
        %v1042 = vpop.f32.mrb[0].mxu0
        %1043 = vmatprep.mubr.bf16.mxu0 0
        %1044 = vmatmul.mubr.bf16.gmra.mrb[0].mxu0 %v961
        %v1045 = vpop.f32.mrb[0].mxu0
        %v1046 = vadd.f32 0.0, %v1045
        %v1047 = vpop.f32.mrb[0].mxu0
        %v1048 = vpop.f32.mrb[0].mxu0
        %v1049 = vadd.f32 0.0, %v1048
        %v1050 = vpop.f32.mrb[0].mxu0
        %1051 = vmatprep.mubr.bf16.mxu0 0
        %1052 = vmatmul.mubr.bf16.gmra.mrb[0].mxu0 %v963
        %v1053 = vpop.f32.mrb[0].mxu0
        %v1054 = vadd.f32 0.0, %v1053
        %v1055 = vpop.f32.mrb[0].mxu0
        %v1056 = vpop.f32.mrb[0].mxu0
        %v1057 = vadd.f32 0.0, %v1056
        %v1058 = vpop.f32.mrb[0].mxu0
        %1059 = vmatprep.mubr.bf16.mxu0 0
        %1060 = vmatmul.mubr.bf16.gmra.mrb[0].mxu0 %v965
        %v1061 = vpop.f32.mrb[0].mxu0
        %v1062 = vadd.f32 0.0, %v1061
        %v1063 = vpop.f32.mrb[0].mxu0
        %v1064 = vpop.f32.mrb[0].mxu0
        %v1065 = vadd.f32 0.0, %v1064
        %v1066 = vpop.f32.mrb[0].mxu0
        %1067 = vdwg.mxu0
        %v1068 = vpack.c.bf16 %v1009, %v1006
        %v1069 = vpack.c.bf16 %v1017, %v1014
        %v1070 = vpack.c.bf16 %v1025, %v1022
        %v1071 = vpack.c.bf16 %v1033, %v1030
        %v1072 = vpack.c.bf16 %v1041, %v1038
        %v1073 = vpack.c.bf16 %v1049, %v1046
        %v1074 = vpack.c.bf16 %v1057, %v1054
        %v1075 = vpack.c.bf16 %v1065, %v1062
        %v1084 = vunpack.c.l.b16 %v1068
        %v1085 = vunpack.c.h.b16 %v1068
        %v1086 = vunpack.c.l.b16 %v1069
        %v1087 = vunpack.c.h.b16 %v1069
        %v1088 = vunpack.c.l.b16 %v1070
        %v1089 = vunpack.c.h.b16 %v1070
        %v1090 = vunpack.c.l.b16 %v1071
        %v1091 = vunpack.c.h.b16 %v1071
        %v1092 = vunpack.c.l.b16 %v1072
        %v1093 = vunpack.c.h.b16 %v1072
        %v1094 = vunpack.c.l.b16 %v1073
        %v1095 = vunpack.c.h.b16 %v1073
        %v1096 = vunpack.c.l.b16 %v1074
        %v1097 = vunpack.c.h.b16 %v1074
        %v1098 = vunpack.c.l.b16 %v1075
        %v1099 = vunpack.c.h.b16 %v1075
        %v1100 = vpack.c.b16 %v1084, %v1084
        %v1101 = vpack.c.b16 %v1085, %v1085
        %v1102 = vpack.c.b16 %v1086, %v1086
        %v1103 = vpack.c.b16 %v1087, %v1087
        %v1104 = vpack.c.b16 %v1088, %v1088
        %v1105 = vpack.c.b16 %v1089, %v1089
        %v1106 = vpack.c.b16 %v1090, %v1090
        %v1107 = vpack.c.b16 %v1091, %v1091
        %v1108 = vpack.c.b16 %v1092, %v1092
        %v1109 = vpack.c.b16 %v1093, %v1093
        %v1110 = vpack.c.b16 %v1094, %v1094
        %v1111 = vpack.c.b16 %v1095, %v1095
        %v1112 = vpack.c.b16 %v1096, %v1096
        %v1113 = vpack.c.b16 %v1097, %v1097
        %v1114 = vpack.c.b16 %v1098, %v1098
        %v1115 = vpack.c.b16 %v1099, %v1099
        %vm1132 = vcmask 257024
        %1133 = vst.msk [vmem:[%s248] sm:$0xf] %vm1132, %v1100
        %1134 = vst.msk [vmem:[%s248 + $0x4] sm:$0xf] %vm1132, %v1101
        %1135 = vst.msk [vmem:[%s248 + $0x8] sm:$0xf] %vm1132, %v1102
        %1136 = vst.msk [vmem:[%s248 + $0xc] sm:$0xf] %vm1132, %v1103
        %1137 = vst.msk [vmem:[%s248 + $0x10] sm:$0xf] %vm1132, %v1104
        %1138 = vst.msk [vmem:[%s248 + $0x14] sm:$0xf] %vm1132, %v1105
        %1139 = vst.msk [vmem:[%s248 + $0x18] sm:$0xf] %vm1132, %v1106
        %1140 = vst.msk [vmem:[%s248 + $0x1c] sm:$0xf] %vm1132, %v1107
        %1141 = vst.msk [vmem:[%s248 + $0x20] sm:$0xf] %vm1132, %v1108
        %1142 = vst.msk [vmem:[%s248 + $0x24] sm:$0xf] %vm1132, %v1109
        %1143 = vst.msk [vmem:[%s248 + $0x28] sm:$0xf] %vm1132, %v1110
        %1144 = vst.msk [vmem:[%s248 + $0x2c] sm:$0xf] %vm1132, %v1111
        %1145 = vst.msk [vmem:[%s248 + $0x30] sm:$0xf] %vm1132, %v1112
        %1146 = vst.msk [vmem:[%s248 + $0x34] sm:$0xf] %vm1132, %v1113
        %1147 = vst.msk [vmem:[%s248 + $0x38] sm:$0xf] %vm1132, %v1114
        %1148 = vst.msk [vmem:[%s248 + $0x3c] sm:$0xf] %vm1132, %v1115
        %v1149 = vsel %vm829, %v1006, 0.0
        %v1150 = vsel %vm829, %v1009, 0.0
        %v1151 = vadd.f32 %v1149, %v1150
        %v1152 = vsel %vm829, %v1014, 0.0
        %v1153 = vadd.f32 %v1151, %v1152
        %v1154 = vsel %vm829, %v1017, 0.0
        %v1155 = vadd.f32 %v1153, %v1154
        %v1156 = vsel %vm829, %v1022, 0.0
        %v1157 = vadd.f32 %v1155, %v1156
        %v1158 = vsel %vm829, %v1025, 0.0
        %v1159 = vadd.f32 %v1157, %v1158
        %v1160 = vsel %vm829, %v1030, 0.0
        %v1161 = vadd.f32 %v1159, %v1160
        %v1162 = vsel %vm829, %v1033, 0.0
        %v1163 = vadd.f32 %v1161, %v1162
        %v1164 = vsel %vm829, %v1038, 0.0
        %v1165 = vadd.f32 %v1163, %v1164
        %v1166 = vsel %vm829, %v1041, 0.0
        %v1167 = vadd.f32 %v1165, %v1166
        %v1168 = vsel %vm829, %v1046, 0.0
        %v1169 = vadd.f32 %v1167, %v1168
        %v1170 = vsel %vm829, %v1049, 0.0
        %v1171 = vadd.f32 %v1169, %v1170
        %v1172 = vsel %vm829, %v1054, 0.0
        %v1173 = vadd.f32 %v1171, %v1172
        %v1174 = vsel %vm829, %v1057, 0.0
        %v1175 = vadd.f32 %v1173, %v1174
        %v1176 = vsel %vm829, %v1062, 0.0
        %v1177 = vadd.f32 %v1175, %v1176
        %v1178 = vsel %vm829, %v1065, 0.0
        %v1179 = vadd.f32 %v1177, %v1178
        %v1180 = vrot.slane %v1179, 4
        %v1181 = vadd.f32 %v1179, %v1180
        %v1182 = vrot.slane %v1181, 2
        %v1183 = vadd.f32 %v1181, %v1182
        %v1184 = vrot.slane %v1183, 1
        %v1185 = vadd.f32 %v1183, %v1184
        %v1186 = vmul.f32 %v1006, %v1006
        %v1187 = vmul.f32 %v1009, %v1009
        %v1188 = vmul.f32 %v1014, %v1014
        %v1189 = vmul.f32 %v1017, %v1017
        %v1190 = vmul.f32 %v1022, %v1022
        %v1191 = vmul.f32 %v1025, %v1025
        %v1192 = vmul.f32 %v1030, %v1030
        %v1193 = vmul.f32 %v1033, %v1033
        %v1194 = vmul.f32 %v1038, %v1038
        %v1195 = vmul.f32 %v1041, %v1041
        %v1196 = vmul.f32 %v1046, %v1046
        %v1197 = vmul.f32 %v1049, %v1049
        %v1198 = vmul.f32 %v1054, %v1054
        %v1199 = vmul.f32 %v1057, %v1057
        %v1200 = vmul.f32 %v1062, %v1062
        %v1201 = vmul.f32 %v1065, %v1065
        %v1202 = vsel %vm829, %v1186, 0.0
        %v1203 = vsel %vm829, %v1187, 0.0
        %v1204 = vadd.f32 %v1202, %v1203
        %v1205 = vsel %vm829, %v1188, 0.0
        %v1206 = vadd.f32 %v1204, %v1205
        %v1207 = vsel %vm829, %v1189, 0.0
        %v1208 = vadd.f32 %v1206, %v1207
        %v1209 = vsel %vm829, %v1190, 0.0
        %v1210 = vadd.f32 %v1208, %v1209
        %v1211 = vsel %vm829, %v1191, 0.0
        %v1212 = vadd.f32 %v1210, %v1211
        %v1213 = vsel %vm829, %v1192, 0.0
        %v1214 = vadd.f32 %v1212, %v1213
        %v1215 = vsel %vm829, %v1193, 0.0
        %v1216 = vadd.f32 %v1214, %v1215
        %v1217 = vsel %vm829, %v1194, 0.0
        %v1218 = vadd.f32 %v1216, %v1217
        %v1219 = vsel %vm829, %v1195, 0.0
        %v1220 = vadd.f32 %v1218, %v1219
        %v1221 = vsel %vm829, %v1196, 0.0
        %v1222 = vadd.f32 %v1220, %v1221
        %v1223 = vsel %vm829, %v1197, 0.0
        %v1224 = vadd.f32 %v1222, %v1223
        %v1225 = vsel %vm829, %v1198, 0.0
        %v1226 = vadd.f32 %v1224, %v1225
        %v1227 = vsel %vm829, %v1199, 0.0
        %v1228 = vadd.f32 %v1226, %v1227
        %v1229 = vsel %vm829, %v1200, 0.0
        %v1230 = vadd.f32 %v1228, %v1229
        %v1231 = vsel %vm829, %v1201, 0.0
        %v1232 = vadd.f32 %v1230, %v1231
        %v1233 = vrot.slane %v1232, 4
        %v1234 = vadd.f32 %v1232, %v1233
        %v1235 = vrot.slane %v1234, 2
        %v1236 = vadd.f32 %v1234, %v1235
        %v1237 = vrot.slane %v1236, 1
        %v1238 = vadd.f32 %v1236, %v1237
        %vm1239 = vcmask 1040384
        %v1240 = vsel %vm1239, %v1185, %v1238
        %vm1241 = vcmask 254976
        %1242 = vst.msk [vmem:[%s255] sm:$0x3] %vm1241, %v1240
        %s1243 = sand.u32 %s121, 1
        %s1244 = scalar_lea.sflag [#allocation4], %s1243
        %s1245 = sand.u32 %s121, 1
        %s1246 = smul.addr %s1245, 64
        %s1247 = scalar_lea.vmem [#allocation3], %s1246
        %s1248 = sand.u32 %s149, 1
        %s1249 = scalar_lea.sflag [#allocation6], %s1248
        %s1250 = sand.u32 %s149, 1
        %s1251 = smul.addr %s1250, 2
        %s1252 = scalar_lea.vmem [#allocation5], %s1251
        // Predicated region
        $region41: #{tpu_custom_call.1} parent=31 // pred_check
          %p1253 = pneg %p131
        $region42: #{tpu_custom_call.1} parent=31 // pred_check_branch
          %1255 = sbr.rel (%p1253) target = $region44
        $region43: #{tpu_custom_call.1} parent=31 // pred_region
          %s1256 = smul.u32 8, %s27
          %s1258 = ssub.s32 1024, 1024
          %1259 = vsyncadd %s1244, %s1258
          %s1260 = smul.addr %s1256, 2
          %s1261 = smul.addr %s26, 32
          %s1262 = sadd.s32 %s1260, %s1261
          %s1263 = smul.addr %s1262, 64
          %s1264 = scalar_lea.hbm %s3, %s1263
          %s1265 = sshll.u32 %s1247, 4
          %s1266 = int_to_ptr.vmem [resolvable:$true] %s1265
          %1271 = dma.vmem_to_hbm [thread:$0]  %s1266, 1024, %s1264, %s1244, 64, 64, 4
        $region44: #{tpu_custom_call.1} parent=31 // pred_fallthru
          _
        // Predicated region
        $region45: #{tpu_custom_call.1} parent=31 // pred_check
          %p1272 = pneg %p159
        $region46: #{tpu_custom_call.1} parent=31 // pred_check_branch
          %1274 = sbr.rel (%p1272) target = $region48
        $region47: #{tpu_custom_call.1} parent=31 // pred_region
          %s1276 = ssub.s32 32, 32
          %1277 = vsyncadd %s1249, %s1276
          %s1278 = smul.addr %s26, 2
          %s1279 = sadd.s32 %s27, %s1278
          %s1280 = smul.addr %s1279, 32
          %s1281 = scalar_lea.hbm %s4, %s1280
          %s1283 = sshll.u32 %s1252, 4
          %s1284 = int_to_ptr.vmem [resolvable:$true] %s1283
          %1286 = dma.vmem_to_hbm [thread:$0]  %s1284, 32, %s1281, %s1249
        $region48: #{tpu_custom_call.1} parent=31 // pred_fallthru
          _
      $region32: #{tpu_custom_call.1} parent=5 // pred_fallthru
        _
      %p1287 = scmp.le.s32.totalorder 2, %s17
      // Predicated region
      $region49: #{tpu_custom_call.1} parent=5 // pred_check
        %p1288 = pneg %p1287
      $region50: #{tpu_custom_call.1} parent=5 // pred_check_branch
        %1290 = sbr.rel (%p1288) target = $region52
      $region51: #{tpu_custom_call.1} parent=5 // pred_region
        %s1291 = ssub.s32 %s17, 2
        // Predicated region
        $region53: #{tpu_custom_call.1} parent=51 // pred_check
          %p1292 = pneg %p137
        $region54: #{tpu_custom_call.1} parent=51 // pred_check_branch
          %1294 = sbr.rel (%p1292) target = $region56
        $region55: #{tpu_custom_call.1} parent=51 // pred_region
          %s1295 = sand.u32 %s122, 1
          %s1296 = scalar_lea.sflag [#allocation4], %s1295
          %s1297 = sand.u32 %s122, 1
          %s1298 = smul.addr %s1297, 64
          %s1299 = scalar_lea.vmem [#allocation3], %s1298
          %1300 = dma.done %s1296, 1024
        $region56: #{tpu_custom_call.1} parent=51 // pred_fallthru
          _
        // Predicated region
        $region57: #{tpu_custom_call.1} parent=51 // pred_check
          %p1301 = pneg %p165
        $region58: #{tpu_custom_call.1} parent=51 // pred_check_branch
          %1303 = sbr.rel (%p1301) target = $region60
        $region59: #{tpu_custom_call.1} parent=51 // pred_region
          %s1304 = sand.u32 %s150, 1
          %s1305 = scalar_lea.sflag [#allocation6], %s1304
          %s1306 = sand.u32 %s150, 1
          %s1307 = smul.addr %s1306, 2
          %s1308 = scalar_lea.vmem [#allocation5], %s1307
          %1309 = dma.done %s1305, 32
        $region60: #{tpu_custom_call.1} parent=51 // pred_fallthru
          _
      $region52: #{tpu_custom_call.1} parent=5 // pred_fallthru
        _
    $region6: #{tpu_custom_call.1} parent=1 // loop_footer
      %s21 = sadd.s32 1, %s17
    $region7: #{tpu_custom_call.1} parent=1 // loop_footer_branch
      %16 = sbr.rel target = $region3
    $region8: #{tpu_custom_call.1} parent=1 // loop_exit
      _
    %1310 = vsyncpa [#allocation4], 1
    %s1311 = scalar_lea.sflag [#allocation4], 1
    %1312 = vsyncpa %s1311, 1
    %1313 = vsyncpa [#allocation6], 1
    %s1314 = scalar_lea.sflag [#allocation6], 1
    %1315 = vsyncpa %s1314, 1

</llo_original>
